<compile_context>
chip_gen: v7x
topology: tpu7x:2x2x1
jax: 0.10.0
libtpu: 0.0.40
codegen_flags: <defaults>
</compile_context>

<pallas_src>
import jax
import jax.numpy as jnp
from jax import lax
from jax.experimental import pallas as pl
from jax.experimental.pallas import tpu as pltpu


def _lag_rnn_kernel(
    x_ref,       # [bt, seq, factors]   batch tile (batch-first)
    wih0_ref,    # [factors, hid]       layer-0 W_ih, pre-transposed
    whh0_ref,    # [hid, hid]           layer-0 W_hh, pre-transposed
    b0_ref,      # [1, hid]             b_ih0 + b_hh0
    wih1_ref,    # [hid, hid]           layer-1 W_ih, pre-transposed
    whh1_ref,    # [hid, hid]           layer-1 W_hh, pre-transposed
    b1_ref,      # [1, hid]             b_ih1 + b_hh1
    wfc_ref,     # [hid, factors]       fc weight, pre-transposed
    bfc_ref,     # [1, factors]
    out_ref,     # [bt, 1, factors]
):
    bt, seq, factors = x_ref.shape
    hid = whh0_ref.shape[0]

    # TODO(synk): dropout is identity at inference; training-time dropout masks not implemented.

    # ---- hoist all recurrent weight / bias loads out of the time loop ----
    whh0 = whh0_ref[...]
    wih1 = wih1_ref[...]
    whh1 = whh1_ref[...]
    b1 = b1_ref[...]

    # ---- batched, time-invariant layer-0 input projection (bias folded in) ----
    x2d = x_ref[...].reshape(bt * seq, factors)
    xw0 = (
        jnp.dot(x2d, wih0_ref[...], preferred_element_type=jnp.float32) + b0_ref[...]
    ).reshape(bt, seq, hid)

    # ---- fused 2-layer recurrence, fully unrolled over the (static) sequence ----
    h0 = jnp.zeros((bt, hid), jnp.float32)
    h1 = jnp.zeros((bt, hid), jnp.float32)
    for t in range(seq):
        h0 = jnp.tanh(
            xw0[:, t, :] + jnp.dot(h0, whh0, preferred_element_type=jnp.float32)
        )
        h1 = jnp.tanh(
            jnp.dot(h0, wih1, preferred_element_type=jnp.float32)
            + jnp.dot(h1, whh1, preferred_element_type=jnp.float32)
            + b1
        )

    # ---- final linear on the last timestep of the top layer ----
    out = jnp.dot(h1, wfc_ref[...], preferred_element_type=jnp.float32) + bfc_ref[...]
    out_ref[...] = out.reshape(bt, 1, factors).astype(out_ref.dtype)


def prepare_params(torch_layout_params):
    """One-time conversion of PyTorch-layout params into kernel layout
    (weights pre-transposed to [in, out], bias pairs folded). Call once,
    outside the per-forward path, so the forward pays no per-call .T / adds."""
    p = torch_layout_params
    f32 = lambda a: jnp.asarray(a, jnp.float32)
    return {
        "wih0": f32(p["wih0"]).T,                          # [factors, hid]
        "whh0": f32(p["whh0"]).T,                          # [hid, hid]
        "b0": (f32(p["bih0"]) + f32(p["bhh0"]))[None, :],  # [1, hid]
        "wih1": f32(p["wih1"]).T,                          # [hid, hid]
        "whh1": f32(p["whh1"]).T,                          # [hid, hid]
        "b1": (f32(p["bih1"]) + f32(p["bhh1"]))[None, :],  # [1, hid]
        "wfc": f32(p["wfc"]).T,                            # [hid, factors]
        "bfc": f32(p["bfc"])[None, :],                     # [1, factors]
    }


def _full_block(shape):
    """Whole-array BlockSpec: same (only) block for every grid step."""
    n = len(shape)

    def index_map(i):
        return (0,) * n

    return pl.BlockSpec(shape, index_map)


def lag_rnn_forward(x_bsf, prep, *, batch_tiles=None):
    """x_bsf: [batch, seq, factors] (PyTorch batch_first layout). Returns [batch, factors]."""
    batch, seq, factors = x_bsf.shape
    hid = prep["whh0"].shape[0]

    if batch_tiles is None:
        # Two batch tiles let the "parallel" grid axis be split across v7x's two
        # TensorCores; it is a harmless 2-iteration serial loop on v5e / v6e.
        batch_tiles = 2 if batch % 2 == 0 else 1
    assert batch % batch_tiles == 0, "batch must divide evenly into batch_tiles"
    bt = batch // batch_tiles

    x = x_bsf.astype(jnp.float32)

    in_specs = [
        pl.BlockSpec((bt, seq, factors), lambda i: (i, 0, 0)),   # x: tiled over batch
        _full_block((factors, hid)),                             # wih0
        _full_block((hid, hid)),                                 # whh0
        _full_block((1, hid)),                                   # b0
        _full_block((hid, hid)),                                 # wih1
        _full_block((hid, hid)),                                 # whh1
        _full_block((1, hid)),                                   # b1
        _full_block((hid, factors)),                             # wfc
        _full_block((1, factors)),                               # bfc
    ]
    # Output kept 3-D [batch, 1, factors] so the batch-tiled block keeps its last two
    # dims equal to the full array dims (avoids the (8,128) divisibility constraint).
    out_specs = pl.BlockSpec((bt, 1, factors), lambda i: (i, 0, 0))

    out = pl.pallas_call(
        _lag_rnn_kernel,
        out_shape=jax.ShapeDtypeStruct((batch, 1, factors), jnp.float32),
        grid=(batch_tiles,),
        in_specs=in_specs,
        out_specs=out_specs,
        compiler_params=pltpu.CompilerParams(
            dimension_semantics=("parallel",),
            # Whole-array-resident design; explicit budget so growth in seq/batch/hid
            # surfaces a clear error well before v7x's 64 MiB physical VMEM ceiling.
            vmem_limit_bytes=32 * 1024 * 1024,
        ),
    )(x, prep["wih0"], prep["whh0"], prep["b0"], prep["wih1"], prep["whh1"],
      prep["b1"], prep["wfc"], prep["bfc"])

    return out.reshape(batch, factors)


def _reference_forward(x_bsf, params):
    """Pure-JAX reference mimicking torch.nn.RNN(tanh, 2 layers) + Linear."""
    batch, seq, factors = x_bsf.shape
    hid = params["whh0"].shape[0]

    def layer(x_tbf, wih, whh, bih, bhh):
        def step(h, x_t):
            h_new = jnp.tanh(x_t @ wih.T + bih + h @ whh.T + bhh)
            return h_new, h_new

        h0 = jnp.zeros((batch, hid), jnp.float32)
        _, ys = lax.scan(step, h0, x_tbf)
        return ys  # [seq, batch, hid]

    x_tbf = jnp.transpose(x_bsf, (1, 0, 2))
    y0 = layer(x_tbf, params["wih0"], params["whh0"], params["bih0"], params["bhh0"])
    y1 = layer(y0, params["wih1"], params["whh1"], params["bih1"], params["bhh1"])
    h_last = y1[-1]  # [batch, hid]
    return h_last @ params["wfc"].T + params["bfc"]


if __name__ == "__main__":
    # small shapes consistent with the module (kernel is written for n_layers=2)
    batch, seq, factors, hid = 8, 8, 16, 32

    key = jax.random.PRNGKey(0)
    ks = jax.random.split(key, 12)
    bound = 1.0 / jnp.sqrt(hid)

    def u(k, shape):
        return jax.random.uniform(k, shape, jnp.float32, -bound, bound)

    params = {
        "wih0": u(ks[0], (hid, factors)),
        "whh0": u(ks[1], (hid, hid)),
        "bih0": u(ks[2], (hid,)),
        "bhh0": u(ks[3], (hid,)),
        "wih1": u(ks[4], (hid, hid)),
        "whh1": u(ks[5], (hid, hid)),
        "bih1": u(ks[6], (hid,)),
        "bhh1": u(ks[7], (hid,)),
        "wfc": u(ks[8], (factors, hid)),
        "bfc": u(ks[9], (factors,)),
    }

    x = jax.random.normal(ks[10], (batch, seq, factors), jnp.float32)

    prep = prepare_params(params)  # one-time layout conversion, outside the per-call path
    out = jax.block_until_ready(lag_rnn_forward(x, prep))
    ref = _reference_forward(x, params)

    assert out.shape == (batch, factors)
    assert jnp.allclose(out, ref, atol=1e-4, rtol=1e-4)
    print("KERNEL_OK")
</pallas_src>

<mosaic_0001>
module attributes {stable_mosaic.version = 11 : i64} {
  func.func @_lag_rnn_kernel(%arg0: i32, %arg1: memref<4x8x16xf32, #tpu.memory_space<vmem>>, %arg2: memref<16x32xf32, #tpu.memory_space<vmem>>, %arg3: memref<32x32xf32, #tpu.memory_space<vmem>>, %arg4: memref<1x32xf32, #tpu.memory_space<vmem>>, %arg5: memref<32x32xf32, #tpu.memory_space<vmem>>, %arg6: memref<32x32xf32, #tpu.memory_space<vmem>>, %arg7: memref<1x32xf32, #tpu.memory_space<vmem>>, %arg8: memref<32x16xf32, #tpu.memory_space<vmem>>, %arg9: memref<1x16xf32, #tpu.memory_space<vmem>>, %arg10: memref<4x1x16xf32, #tpu.memory_space<vmem>>) attributes {dimension_semantics = [#tpu.dimension_semantics<parallel>], iteration_bounds = array<i64: 2>, scalar_prefetch = 0 : i64, scratch_operands = 0 : i64, tpu.core_type = #tpu.core_type<tc>, window_params = [{transform_indices = @transform_0, window_bounds = array<i64: 4, 8, 16>}, {pipeline_mode = #tpu.pipeline_mode<synchronous>, transform_indices = @transform_1, window_bounds = array<i64: 16, 32>}, {pipeline_mode = #tpu.pipeline_mode<synchronous>, transform_indices = @transform_2, window_bounds = array<i64: 32, 32>}, {pipeline_mode = #tpu.pipeline_mode<synchronous>, transform_indices = @transform_3, window_bounds = array<i64: 1, 32>}, {pipeline_mode = #tpu.pipeline_mode<synchronous>, transform_indices = @transform_4, window_bounds = array<i64: 32, 32>}, {pipeline_mode = #tpu.pipeline_mode<synchronous>, transform_indices = @transform_5, window_bounds = array<i64: 32, 32>}, {pipeline_mode = #tpu.pipeline_mode<synchronous>, transform_indices = @transform_6, window_bounds = array<i64: 1, 32>}, {pipeline_mode = #tpu.pipeline_mode<synchronous>, transform_indices = @transform_7, window_bounds = array<i64: 32, 16>}, {pipeline_mode = #tpu.pipeline_mode<synchronous>, transform_indices = @transform_8, window_bounds = array<i64: 1, 16>}, {transform_indices = @transform_9, window_bounds = array<i64: 4, 1, 16>}]} {
    %c0 = arith.constant 0 : index
    %c0_0 = arith.constant 0 : index
    %0 = vector.load %arg3[%c0, %c0_0] : memref<32x32xf32, #tpu.memory_space<vmem>>, vector<32x32xf32>
    %c0_1 = arith.constant 0 : index
    %c0_2 = arith.constant 0 : index
    %1 = vector.load %arg5[%c0_1, %c0_2] : memref<32x32xf32, #tpu.memory_space<vmem>>, vector<32x32xf32>
    %c0_3 = arith.constant 0 : index
    %c0_4 = arith.constant 0 : index
    %2 = vector.load %arg6[%c0_3, %c0_4] : memref<32x32xf32, #tpu.memory_space<vmem>>, vector<32x32xf32>
    %c0_5 = arith.constant 0 : index
    %c0_6 = arith.constant 0 : index
    %3 = vector.load %arg7[%c0_5, %c0_6] : memref<1x32xf32, #tpu.memory_space<vmem>>, vector<1x32xf32>
    %c0_7 = arith.constant 0 : index
    %c0_8 = arith.constant 0 : index
    %c0_9 = arith.constant 0 : index
    %4 = vector.load %arg1[%c0_7, %c0_8, %c0_9] : memref<4x8x16xf32, #tpu.memory_space<vmem>>, vector<4x8x16xf32>
    %5 = vector.shape_cast %4 : vector<4x8x16xf32> to vector<32x16xf32>
    %c0_10 = arith.constant 0 : index
    %c0_11 = arith.constant 0 : index
    %6 = vector.load %arg2[%c0_10, %c0_11] : memref<16x32xf32, #tpu.memory_space<vmem>>, vector<16x32xf32>
    %cst = arith.constant dense<0.000000e+00> : vector<32x32xf32>
    %7 = tpu.matmul %5, %6, %cst {dimension_numbers = #tpu.dot_dimension_numbers<[1], [0], [0], [1], [0, 0, 1, 1], [], []>} : vector<32x16xf32>, vector<16x32xf32>, vector<32x32xf32> -> vector<32x32xf32>
    %c0_12 = arith.constant 0 : index
    %c0_13 = arith.constant 0 : index
    %8 = vector.load %arg4[%c0_12, %c0_13] : memref<1x32xf32, #tpu.memory_space<vmem>>, vector<1x32xf32>
    %9 = vector.broadcast %8 : vector<1x32xf32> to vector<32x32xf32>
    %10 = arith.addf %7, %9 : vector<32x32xf32>
    %11 = vector.shape_cast %10 : vector<32x32xf32> to vector<4x8x32xf32>
    %cst_14 = arith.constant 0.000000e+00 : f32
    %12 = vector.broadcast %cst_14 : f32 to vector<4x32xf32>
    %cst_15 = arith.constant 0.000000e+00 : f32
    %13 = vector.broadcast %cst_15 : f32 to vector<4x32xf32>
    %14 = vector.extract_strided_slice %11 {offsets = [0, 0, 0], sizes = [4, 1, 32], strides = [1, 1, 1]} : vector<4x8x32xf32> to vector<4x1x32xf32>
    %15 = vector.shape_cast %14 : vector<4x1x32xf32> to vector<4x32xf32>
    %cst_16 = arith.constant dense<0.000000e+00> : vector<4x32xf32>
    %16 = tpu.matmul %12, %0, %cst_16 {dimension_numbers = #tpu.dot_dimension_numbers<[1], [0], [0], [1], [0, 0, 1, 1], [], []>} : vector<4x32xf32>, vector<32x32xf32>, vector<4x32xf32> -> vector<4x32xf32>
    %17 = arith.addf %15, %16 : vector<4x32xf32>
    %18 = math.tanh %17 : vector<4x32xf32>
    %cst_17 = arith.constant dense<0.000000e+00> : vector<4x32xf32>
    %19 = tpu.matmul %18, %1, %cst_17 {dimension_numbers = #tpu.dot_dimension_numbers<[1], [0], [0], [1], [0, 0, 1, 1], [], []>} : vector<4x32xf32>, vector<32x32xf32>, vector<4x32xf32> -> vector<4x32xf32>
    %cst_18 = arith.constant dense<0.000000e+00> : vector<4x32xf32>
    %20 = tpu.matmul %13, %2, %cst_18 {dimension_numbers = #tpu.dot_dimension_numbers<[1], [0], [0], [1], [0, 0, 1, 1], [], []>} : vector<4x32xf32>, vector<32x32xf32>, vector<4x32xf32> -> vector<4x32xf32>
    %21 = arith.addf %19, %20 : vector<4x32xf32>
    %22 = vector.broadcast %3 : vector<1x32xf32> to vector<4x32xf32>
    %23 = arith.addf %21, %22 : vector<4x32xf32>
    %24 = math.tanh %23 : vector<4x32xf32>
    %25 = vector.extract_strided_slice %11 {offsets = [0, 1, 0], sizes = [4, 1, 32], strides = [1, 1, 1]} : vector<4x8x32xf32> to vector<4x1x32xf32>
    %26 = vector.shape_cast %25 : vector<4x1x32xf32> to vector<4x32xf32>
    %cst_19 = arith.constant dense<0.000000e+00> : vector<4x32xf32>
    %27 = tpu.matmul %18, %0, %cst_19 {dimension_numbers = #tpu.dot_dimension_numbers<[1], [0], [0], [1], [0, 0, 1, 1], [], []>} : vector<4x32xf32>, vector<32x32xf32>, vector<4x32xf32> -> vector<4x32xf32>
    %28 = arith.addf %26, %27 : vector<4x32xf32>
    %29 = math.tanh %28 : vector<4x32xf32>
    %cst_20 = arith.constant dense<0.000000e+00> : vector<4x32xf32>
    %30 = tpu.matmul %29, %1, %cst_20 {dimension_numbers = #tpu.dot_dimension_numbers<[1], [0], [0], [1], [0, 0, 1, 1], [], []>} : vector<4x32xf32>, vector<32x32xf32>, vector<4x32xf32> -> vector<4x32xf32>
    %cst_21 = arith.constant dense<0.000000e+00> : vector<4x32xf32>
    %31 = tpu.matmul %24, %2, %cst_21 {dimension_numbers = #tpu.dot_dimension_numbers<[1], [0], [0], [1], [0, 0, 1, 1], [], []>} : vector<4x32xf32>, vector<32x32xf32>, vector<4x32xf32> -> vector<4x32xf32>
    %32 = arith.addf %30, %31 : vector<4x32xf32>
    %33 = vector.broadcast %3 : vector<1x32xf32> to vector<4x32xf32>
    %34 = arith.addf %32, %33 : vector<4x32xf32>
    %35 = math.tanh %34 : vector<4x32xf32>
    %36 = vector.extract_strided_slice %11 {offsets = [0, 2, 0], sizes = [4, 1, 32], strides = [1, 1, 1]} : vector<4x8x32xf32> to vector<4x1x32xf32>
    %37 = vector.shape_cast %36 : vector<4x1x32xf32> to vector<4x32xf32>
    %cst_22 = arith.constant dense<0.000000e+00> : vector<4x32xf32>
    %38 = tpu.matmul %29, %0, %cst_22 {dimension_numbers = #tpu.dot_dimension_numbers<[1], [0], [0], [1], [0, 0, 1, 1], [], []>} : vector<4x32xf32>, vector<32x32xf32>, vector<4x32xf32> -> vector<4x32xf32>
    %39 = arith.addf %37, %38 : vector<4x32xf32>
    %40 = math.tanh %39 : vector<4x32xf32>
    %cst_23 = arith.constant dense<0.000000e+00> : vector<4x32xf32>
    %41 = tpu.matmul %40, %1, %cst_23 {dimension_numbers = #tpu.dot_dimension_numbers<[1], [0], [0], [1], [0, 0, 1, 1], [], []>} : vector<4x32xf32>, vector<32x32xf32>, vector<4x32xf32> -> vector<4x32xf32>
    %cst_24 = arith.constant dense<0.000000e+00> : vector<4x32xf32>
    %42 = tpu.matmul %35, %2, %cst_24 {dimension_numbers = #tpu.dot_dimension_numbers<[1], [0], [0], [1], [0, 0, 1, 1], [], []>} : vector<4x32xf32>, vector<32x32xf32>, vector<4x32xf32> -> vector<4x32xf32>
    %43 = arith.addf %41, %42 : vector<4x32xf32>
    %44 = vector.broadcast %3 : vector<1x32xf32> to vector<4x32xf32>
    %45 = arith.addf %43, %44 : vector<4x32xf32>
    %46 = math.tanh %45 : vector<4x32xf32>
    %47 = vector.extract_strided_slice %11 {offsets = [0, 3, 0], sizes = [4, 1, 32], strides = [1, 1, 1]} : vector<4x8x32xf32> to vector<4x1x32xf32>
    %48 = vector.shape_cast %47 : vector<4x1x32xf32> to vector<4x32xf32>
    %cst_25 = arith.constant dense<0.000000e+00> : vector<4x32xf32>
    %49 = tpu.matmul %40, %0, %cst_25 {dimension_numbers = #tpu.dot_dimension_numbers<[1], [0], [0], [1], [0, 0, 1, 1], [], []>} : vector<4x32xf32>, vector<32x32xf32>, vector<4x32xf32> -> vector<4x32xf32>
    %50 = arith.addf %48, %49 : vector<4x32xf32>
    %51 = math.tanh %50 : vector<4x32xf32>
    %cst_26 = arith.constant dense<0.000000e+00> : vector<4x32xf32>
    %52 = tpu.matmul %51, %1, %cst_26 {dimension_numbers = #tpu.dot_dimension_numbers<[1], [0], [0], [1], [0, 0, 1, 1], [], []>} : vector<4x32xf32>, vector<32x32xf32>, vector<4x32xf32> -> vector<4x32xf32>
    %cst_27 = arith.constant dense<0.000000e+00> : vector<4x32xf32>
    %53 = tpu.matmul %46, %2, %cst_27 {dimension_numbers = #tpu.dot_dimension_numbers<[1], [0], [0], [1], [0, 0, 1, 1], [], []>} : vector<4x32xf32>, vector<32x32xf32>, vector<4x32xf32> -> vector<4x32xf32>
    %54 = arith.addf %52, %53 : vector<4x32xf32>
    %55 = vector.broadcast %3 : vector<1x32xf32> to vector<4x32xf32>
    %56 = arith.addf %54, %55 : vector<4x32xf32>
    %57 = math.tanh %56 : vector<4x32xf32>
    %58 = vector.extract_strided_slice %11 {offsets = [0, 4, 0], sizes = [4, 1, 32], strides = [1, 1, 1]} : vector<4x8x32xf32> to vector<4x1x32xf32>
    %59 = vector.shape_cast %58 : vector<4x1x32xf32> to vector<4x32xf32>
    %cst_28 = arith.constant dense<0.000000e+00> : vector<4x32xf32>
    %60 = tpu.matmul %51, %0, %cst_28 {dimension_numbers = #tpu.dot_dimension_numbers<[1], [0], [0], [1], [0, 0, 1, 1], [], []>} : vector<4x32xf32>, vector<32x32xf32>, vector<4x32xf32> -> vector<4x32xf32>
    %61 = arith.addf %59, %60 : vector<4x32xf32>
    %62 = math.tanh %61 : vector<4x32xf32>
    %cst_29 = arith.constant dense<0.000000e+00> : vector<4x32xf32>
    %63 = tpu.matmul %62, %1, %cst_29 {dimension_numbers = #tpu.dot_dimension_numbers<[1], [0], [0], [1], [0, 0, 1, 1], [], []>} : vector<4x32xf32>, vector<32x32xf32>, vector<4x32xf32> -> vector<4x32xf32>
    %cst_30 = arith.constant dense<0.000000e+00> : vector<4x32xf32>
    %64 = tpu.matmul %57, %2, %cst_30 {dimension_numbers = #tpu.dot_dimension_numbers<[1], [0], [0], [1], [0, 0, 1, 1], [], []>} : vector<4x32xf32>, vector<32x32xf32>, vector<4x32xf32> -> vector<4x32xf32>
    %65 = arith.addf %63, %64 : vector<4x32xf32>
    %66 = vector.broadcast %3 : vector<1x32xf32> to vector<4x32xf32>
    %67 = arith.addf %65, %66 : vector<4x32xf32>
    %68 = math.tanh %67 : vector<4x32xf32>
    %69 = vector.extract_strided_slice %11 {offsets = [0, 5, 0], sizes = [4, 1, 32], strides = [1, 1, 1]} : vector<4x8x32xf32> to vector<4x1x32xf32>
    %70 = vector.shape_cast %69 : vector<4x1x32xf32> to vector<4x32xf32>
    %cst_31 = arith.constant dense<0.000000e+00> : vector<4x32xf32>
    %71 = tpu.matmul %62, %0, %cst_31 {dimension_numbers = #tpu.dot_dimension_numbers<[1], [0], [0], [1], [0, 0, 1, 1], [], []>} : vector<4x32xf32>, vector<32x32xf32>, vector<4x32xf32> -> vector<4x32xf32>
    %72 = arith.addf %70, %71 : vector<4x32xf32>
    %73 = math.tanh %72 : vector<4x32xf32>
    %cst_32 = arith.constant dense<0.000000e+00> : vector<4x32xf32>
    %74 = tpu.matmul %73, %1, %cst_32 {dimension_numbers = #tpu.dot_dimension_numbers<[1], [0], [0], [1], [0, 0, 1, 1], [], []>} : vector<4x32xf32>, vector<32x32xf32>, vector<4x32xf32> -> vector<4x32xf32>
    %cst_33 = arith.constant dense<0.000000e+00> : vector<4x32xf32>
    %75 = tpu.matmul %68, %2, %cst_33 {dimension_numbers = #tpu.dot_dimension_numbers<[1], [0], [0], [1], [0, 0, 1, 1], [], []>} : vector<4x32xf32>, vector<32x32xf32>, vector<4x32xf32> -> vector<4x32xf32>
    %76 = arith.addf %74, %75 : vector<4x32xf32>
    %77 = vector.broadcast %3 : vector<1x32xf32> to vector<4x32xf32>
    %78 = arith.addf %76, %77 : vector<4x32xf32>
    %79 = math.tanh %78 : vector<4x32xf32>
    %80 = vector.extract_strided_slice %11 {offsets = [0, 6, 0], sizes = [4, 1, 32], strides = [1, 1, 1]} : vector<4x8x32xf32> to vector<4x1x32xf32>
    %81 = vector.shape_cast %80 : vector<4x1x32xf32> to vector<4x32xf32>
    %cst_34 = arith.constant dense<0.000000e+00> : vector<4x32xf32>
    %82 = tpu.matmul %73, %0, %cst_34 {dimension_numbers = #tpu.dot_dimension_numbers<[1], [0], [0], [1], [0, 0, 1, 1], [], []>} : vector<4x32xf32>, vector<32x32xf32>, vector<4x32xf32> -> vector<4x32xf32>
    %83 = arith.addf %81, %82 : vector<4x32xf32>
    %84 = math.tanh %83 : vector<4x32xf32>
    %cst_35 = arith.constant dense<0.000000e+00> : vector<4x32xf32>
    %85 = tpu.matmul %84, %1, %cst_35 {dimension_numbers = #tpu.dot_dimension_numbers<[1], [0], [0], [1], [0, 0, 1, 1], [], []>} : vector<4x32xf32>, vector<32x32xf32>, vector<4x32xf32> -> vector<4x32xf32>
    %cst_36 = arith.constant dense<0.000000e+00> : vector<4x32xf32>
    %86 = tpu.matmul %79, %2, %cst_36 {dimension_numbers = #tpu.dot_dimension_numbers<[1], [0], [0], [1], [0, 0, 1, 1], [], []>} : vector<4x32xf32>, vector<32x32xf32>, vector<4x32xf32> -> vector<4x32xf32>
    %87 = arith.addf %85, %86 : vector<4x32xf32>
    %88 = vector.broadcast %3 : vector<1x32xf32> to vector<4x32xf32>
    %89 = arith.addf %87, %88 : vector<4x32xf32>
    %90 = math.tanh %89 : vector<4x32xf32>
    %91 = vector.extract_strided_slice %11 {offsets = [0, 7, 0], sizes = [4, 1, 32], strides = [1, 1, 1]} : vector<4x8x32xf32> to vector<4x1x32xf32>
    %92 = vector.shape_cast %91 : vector<4x1x32xf32> to vector<4x32xf32>
    %cst_37 = arith.constant dense<0.000000e+00> : vector<4x32xf32>
    %93 = tpu.matmul %84, %0, %cst_37 {dimension_numbers = #tpu.dot_dimension_numbers<[1], [0], [0], [1], [0, 0, 1, 1], [], []>} : vector<4x32xf32>, vector<32x32xf32>, vector<4x32xf32> -> vector<4x32xf32>
    %94 = arith.addf %92, %93 : vector<4x32xf32>
    %95 = math.tanh %94 : vector<4x32xf32>
    %cst_38 = arith.constant dense<0.000000e+00> : vector<4x32xf32>
    %96 = tpu.matmul %95, %1, %cst_38 {dimension_numbers = #tpu.dot_dimension_numbers<[1], [0], [0], [1], [0, 0, 1, 1], [], []>} : vector<4x32xf32>, vector<32x32xf32>, vector<4x32xf32> -> vector<4x32xf32>
    %cst_39 = arith.constant dense<0.000000e+00> : vector<4x32xf32>
    %97 = tpu.matmul %90, %2, %cst_39 {dimension_numbers = #tpu.dot_dimension_numbers<[1], [0], [0], [1], [0, 0, 1, 1], [], []>} : vector<4x32xf32>, vector<32x32xf32>, vector<4x32xf32> -> vector<4x32xf32>
    %98 = arith.addf %96, %97 : vector<4x32xf32>
    %99 = vector.broadcast %3 : vector<1x32xf32> to vector<4x32xf32>
    %100 = arith.addf %98, %99 : vector<4x32xf32>
    %101 = math.tanh %100 : vector<4x32xf32>
    %c0_40 = arith.constant 0 : index
    %c0_41 = arith.constant 0 : index
    %102 = vector.load %arg8[%c0_40, %c0_41] : memref<32x16xf32, #tpu.memory_space<vmem>>, vector<32x16xf32>
    %cst_42 = arith.constant dense<0.000000e+00> : vector<4x16xf32>
    %103 = tpu.matmul %101, %102, %cst_42 {dimension_numbers = #tpu.dot_dimension_numbers<[1], [0], [0], [1], [0, 0, 1, 1], [], []>} : vector<4x32xf32>, vector<32x16xf32>, vector<4x16xf32> -> vector<4x16xf32>
    %c0_43 = arith.constant 0 : index
    %c0_44 = arith.constant 0 : index
    %104 = vector.load %arg9[%c0_43, %c0_44] : memref<1x16xf32, #tpu.memory_space<vmem>>, vector<1x16xf32>
    %105 = vector.broadcast %104 : vector<1x16xf32> to vector<4x16xf32>
    %106 = arith.addf %103, %105 : vector<4x16xf32>
    %107 = vector.shape_cast %106 : vector<4x16xf32> to vector<4x1x16xf32>
    %c0_45 = arith.constant 0 : index
    %c0_46 = arith.constant 0 : index
    %c0_47 = arith.constant 0 : index
    %108 = vector.load %arg10[%c0_45, %c0_46, %c0_47] : memref<4x1x16xf32, #tpu.memory_space<vmem>>, vector<4x1x16xf32>
    tpu.vector_store %arg10[%c0_45, %c0_46, %c0_47], %107 {strides = array<i32>} : memref<4x1x16xf32, #tpu.memory_space<vmem>>, vector<4x1x16xf32>,
    return
  }
  func.func @transform_0(%arg0: i32) -> (i32, i32, i32) {
    %c0_i32 = arith.constant 0 : i32
    %c0_i32_0 = arith.constant 0 : i32
    %c0_i32_1 = arith.constant 0 : i32
    return %arg0, %c0_i32, %c0_i32_0 : i32, i32, i32
  }
  func.func @transform_1(%arg0: i32) -> (i32, i32) {
    %c0_i32 = arith.constant 0 : i32
    %c0_i32_0 = arith.constant 0 : i32
    %c0_i32_1 = arith.constant 0 : i32
    return %c0_i32, %c0_i32_0 : i32, i32
  }
  func.func @transform_2(%arg0: i32) -> (i32, i32) {
    %c0_i32 = arith.constant 0 : i32
    %c0_i32_0 = arith.constant 0 : i32
    %c0_i32_1 = arith.constant 0 : i32
    return %c0_i32, %c0_i32_0 : i32, i32
  }
  func.func @transform_3(%arg0: i32) -> (i32, i32) {
    %c0_i32 = arith.constant 0 : i32
    %c0_i32_0 = arith.constant 0 : i32
    %c0_i32_1 = arith.constant 0 : i32
    return %c0_i32, %c0_i32_0 : i32, i32
  }
  func.func @transform_4(%arg0: i32) -> (i32, i32) {
    %c0_i32 = arith.constant 0 : i32
    %c0_i32_0 = arith.constant 0 : i32
    %c0_i32_1 = arith.constant 0 : i32
    return %c0_i32, %c0_i32_0 : i32, i32
  }
  func.func @transform_5(%arg0: i32) -> (i32, i32) {
    %c0_i32 = arith.constant 0 : i32
    %c0_i32_0 = arith.constant 0 : i32
    %c0_i32_1 = arith.constant 0 : i32
    return %c0_i32, %c0_i32_0 : i32, i32
  }
  func.func @transform_6(%arg0: i32) -> (i32, i32) {
    %c0_i32 = arith.constant 0 : i32
    %c0_i32_0 = arith.constant 0 : i32
    %c0_i32_1 = arith.constant 0 : i32
    return %c0_i32, %c0_i32_0 : i32, i32
  }
  func.func @transform_7(%arg0: i32) -> (i32, i32) {
    %c0_i32 = arith.constant 0 : i32
    %c0_i32_0 = arith.constant 0 : i32
    %c0_i32_1 = arith.constant 0 : i32
    return %c0_i32, %c0_i32_0 : i32, i32
  }
  func.func @transform_8(%arg0: i32) -> (i32, i32) {
    %c0_i32 = arith.constant 0 : i32
    %c0_i32_0 = arith.constant 0 : i32
    %c0_i32_1 = arith.constant 0 : i32
    return %c0_i32, %c0_i32_0 : i32, i32
  }
  func.func @transform_9(%arg0: i32) -> (i32, i32, i32) {
    %c0_i32 = arith.constant 0 : i32
    %c0_i32_0 = arith.constant 0 : i32
    %c0_i32_1 = arith.constant 0 : i32
    return %arg0, %c0_i32, %c0_i32_0 : i32, i32, i32
  }
}

</mosaic_0001>

<llo_original>
// kernel: tpu_custom_call.1
$region0: #{tpu_custom_call.1}
  #allocation0 [shape = 'u32[]', space=smem, size = 0x4, offset = 0x4, fixed_abs, tag = 'smem constant byte address 0x4 - core index']
  #allocation1 [shape = 'u32[144,128]{1,0:T(1,128)}', space=vmem, size = 0x12000, scoped, tag = 'internal scratch']
  %s0 = inlined_call_operand.hbm [shape: f32[8,8,16], index: 0, kind: input, shape index: {}]
  %s1 = inlined_call_operand.hbm [shape: f32[16,32], index: 1, kind: input, shape index: {}]
  %s2 = inlined_call_operand.vmem [shape: f32[32,32], index: 2, kind: input, shape index: {}]
  %s3 = inlined_call_operand.vmem [shape: f32[1,32], index: 3, kind: input, shape index: {}]
  %s4 = inlined_call_operand.hbm [shape: f32[32,32], index: 4, kind: input, shape index: {}]
  %s5 = inlined_call_operand.vmem [shape: f32[32,32], index: 5, kind: input, shape index: {}]
  %s6 = inlined_call_operand.vmem [shape: f32[1,32], index: 6, kind: input, shape index: {}]
  %s7 = inlined_call_operand.vmem [shape: f32[32,16], index: 7, kind: input, shape index: {}]
  %s8 = inlined_call_operand.vmem [shape: f32[1,16], index: 8, kind: input, shape index: {}]
  %s9 = inlined_call_operand.hbm [shape: f32[8,1,16], index: 9, kind: output, shape index: {}]
  %s10 = sld [smem:[#allocation0]]
  $region81: #{tpu_custom_call.1} parent=0
    _
  %s12 = ssub.s32 1, %s10
  %s13 = scalar_select 0, %s12, %s10
  $region1: #{tpu_custom_call.1} parent=0
    #allocation2 [shape = 'u8[32768]{0}', space=vmem, size = 0x8000, scoped, tag = 'input window, operand 0']
    #allocation3 [shape = 's32[2]{0}', space=sflag, size = 0x8, scoped, tag = 'scoped memory for tpu_custom_call.1']
    #allocation4 [shape = 's32[2]{0}', space=sflag, size = 0x8, scoped, tag = 'scoped memory for tpu_custom_call.1']
    #allocation5 [shape = 'u8[8192]{0}', space=vmem, size = 0x2000, scoped, tag = 'input window, operand 1, single buffered']
    #allocation6 [shape = 's32[1]{0}', space=sflag, size = 0x4, scoped, tag = 'scoped memory for tpu_custom_call.1']
    #allocation7 [shape = 'u8[16384]{0}', space=vmem, size = 0x4000, scoped, tag = 'input window, operand 4, single buffered']
    #allocation8 [shape = 'u8[4096]{0}', space=vmem, size = 0x1000, scoped, tag = 'output window, operand 0']
    %14 = vsyncpa [#allocation3], 0
    %s15 = scalar_lea.sflag [#allocation3], 1
    %16 = vsyncpa %s15, 0
    %17 = vsyncpa [#allocation6], 0
    %18 = vsyncpa [#allocation4], 0
    %s19 = scalar_lea.sflag [#allocation4], 1
    %20 = vsyncpa %s19, 0
    loop: start=0, step=1, limit=4
    $region2: #{tpu_custom_call.1} parent=1 // loop_pre_header
      _
    $region3: #{tpu_custom_call.1} parent=1 // loop_header
      %s22 = sphi 0, %s26
      %p23 = scmp.ge.s32.totalorder %s22, 4
      %s32 = sphi 0, %s34
      %s35 = sphi 0, %s32
      %s36 = sphi 0, %s35
      %s52 = sphi 0, %s36
      %s56 = sphi 0, %s56
      %s58 = sphi 0, %s56
      %s59 = sphi 0, %s58
      %s73 = sphi 0, %s59
      %s77 = sphi 0, %s77
      %s79 = sphi 0, %s77
      %s80 = sphi 0, %s79
      %s94 = sphi 0, %s80
      %s98 = sphi 0, %s98
      %s100 = sphi 0, %s98
      %s101 = sphi 0, %s100
      %s115 = sphi 0, %s101
      %s119 = sphi 0, %s119
      %s121 = sphi 0, %s119
      %s122 = sphi 0, %s121
      %s136 = sphi 0, %s122
      %s140 = sphi 0, %s140
      %s142 = sphi 0, %s140
      %s143 = sphi 0, %s142
      %s157 = sphi 0, %s143
      %s161 = sphi 0, %s161
      %s163 = sphi 0, %s161
      %s164 = sphi 0, %s163
      %s178 = sphi 0, %s164
      %s182 = sphi 0, %s182
      %s184 = sphi 0, %s182
      %s185 = sphi 0, %s184
      %s199 = sphi 0, %s185
      %s203 = sphi 0, %s203
      %s205 = sphi 0, %s203
      %s206 = sphi 0, %s205
      %s220 = sphi 0, %s206
      %s226 = sphi 0, %s228
      %s229 = sphi 0, %s226
      %s230 = sphi 0, %s229
      %s246 = sphi 0, %s230
    $region4: #{tpu_custom_call.1} parent=1 // loop_header_branch
      %25 = sbr.rel (%p23) target = $region8
    $region5: #{tpu_custom_call.1} parent=1 // loop_body
      %s27 = ssub.s32 %s22, 1
      %s28 = ssub.s32 %s22, 2
      %s29 = sadd.s32 %s22, 1
      %s30 = ssub.s32 %s22, %s29
      %p31 = scmp.eq.s32.totalorder %s30, 0
      %s33 = sadd.s32 %s32, 1
      %s34 = scalar_select %p31, %s32, %s33
      %p37 = pneg %p31
      %p38 = scmp.eq.s32.totalorder %s22, 1
      %p39 = por %p37, %p38
      %p40 = scmp.ne.s32.totalorder %s32, %s35
      %p41 = scmp.eq.s32.totalorder %s22, 0
      %p42 = por %p40, %p41
      %p43 = scmp.ne.s32.totalorder %s32, %s35
      %p44 = scmp.eq.s32.totalorder %s27, 1
      %p45 = por %p43, %p44
      %p46 = scmp.ne.s32.totalorder %s35, %s36
      %p47 = scmp.eq.s32.totalorder %s27, 0
      %p48 = por %p46, %p47
      %p49 = scmp.ne.s32.totalorder %s35, %s36
      %p50 = scmp.eq.s32.totalorder %s28, 1
      %p51 = por %p49, %p50
      %p53 = scmp.ne.s32.totalorder %s36, %s52
      %p54 = scmp.eq.s32.totalorder %s28, 0
      %p55 = por %p53, %p54
      %s57 = sadd.s32 %s56, 1
      %p60 = scmp.eq.s32.totalorder %s22, 1
      %p61 = scmp.ne.s32.totalorder %s56, %s58
      %p62 = scmp.eq.s32.totalorder %s22, 0
      %p63 = por %p61, %p62
      %p64 = scmp.ne.s32.totalorder %s56, %s58
      %p65 = scmp.eq.s32.totalorder %s27, 1
      %p66 = por %p64, %p65
      %p67 = scmp.ne.s32.totalorder %s58, %s59
      %p68 = scmp.eq.s32.totalorder %s27, 0
      %p69 = por %p67, %p68
      %p70 = scmp.ne.s32.totalorder %s58, %s59
      %p71 = scmp.eq.s32.totalorder %s28, 1
      %p72 = por %p70, %p71
      %p74 = scmp.ne.s32.totalorder %s59, %s73
      %p75 = scmp.eq.s32.totalorder %s28, 0
      %p76 = por %p74, %p75
      %s78 = sadd.s32 %s77, 1
      %p81 = scmp.eq.s32.totalorder %s22, 1
      %p82 = scmp.ne.s32.totalorder %s77, %s79
      %p83 = scmp.eq.s32.totalorder %s22, 0
      %p84 = por %p82, %p83
      %p85 = scmp.ne.s32.totalorder %s77, %s79
      %p86 = scmp.eq.s32.totalorder %s27, 1
      %p87 = por %p85, %p86
      %p88 = scmp.ne.s32.totalorder %s79, %s80
      %p89 = scmp.eq.s32.totalorder %s27, 0
      %p90 = por %p88, %p89
      %p91 = scmp.ne.s32.totalorder %s79, %s80
      %p92 = scmp.eq.s32.totalorder %s28, 1
      %p93 = por %p91, %p92
      %p95 = scmp.ne.s32.totalorder %s80, %s94
      %p96 = scmp.eq.s32.totalorder %s28, 0
      %p97 = por %p95, %p96
      %s99 = sadd.s32 %s98, 1
      %p102 = scmp.eq.s32.totalorder %s22, 1
      %p103 = scmp.ne.s32.totalorder %s98, %s100
      %p104 = scmp.eq.s32.totalorder %s22, 0
      %p105 = por %p103, %p104
      %p106 = scmp.ne.s32.totalorder %s98, %s100
      %p107 = scmp.eq.s32.totalorder %s27, 1
      %p108 = por %p106, %p107
      %p109 = scmp.ne.s32.totalorder %s100, %s101
      %p110 = scmp.eq.s32.totalorder %s27, 0
      %p111 = por %p109, %p110
      %p112 = scmp.ne.s32.totalorder %s100, %s101
      %p113 = scmp.eq.s32.totalorder %s28, 1
      %p114 = por %p112, %p113
      %p116 = scmp.ne.s32.totalorder %s101, %s115
      %p117 = scmp.eq.s32.totalorder %s28, 0
      %p118 = por %p116, %p117
      %s120 = sadd.s32 %s119, 1
      %p123 = scmp.eq.s32.totalorder %s22, 1
      %p124 = scmp.ne.s32.totalorder %s119, %s121
      %p125 = scmp.eq.s32.totalorder %s22, 0
      %p126 = por %p124, %p125
      %p127 = scmp.ne.s32.totalorder %s119, %s121
      %p128 = scmp.eq.s32.totalorder %s27, 1
      %p129 = por %p127, %p128
      %p130 = scmp.ne.s32.totalorder %s121, %s122
      %p131 = scmp.eq.s32.totalorder %s27, 0
      %p132 = por %p130, %p131
      %p133 = scmp.ne.s32.totalorder %s121, %s122
      %p134 = scmp.eq.s32.totalorder %s28, 1
      %p135 = por %p133, %p134
      %p137 = scmp.ne.s32.totalorder %s122, %s136
      %p138 = scmp.eq.s32.totalorder %s28, 0
      %p139 = por %p137, %p138
      %s141 = sadd.s32 %s140, 1
      %p144 = scmp.eq.s32.totalorder %s22, 1
      %p145 = scmp.ne.s32.totalorder %s140, %s142
      %p146 = scmp.eq.s32.totalorder %s22, 0
      %p147 = por %p145, %p146
      %p148 = scmp.ne.s32.totalorder %s140, %s142
      %p149 = scmp.eq.s32.totalorder %s27, 1
      %p150 = por %p148, %p149
      %p151 = scmp.ne.s32.totalorder %s142, %s143
      %p152 = scmp.eq.s32.totalorder %s27, 0
      %p153 = por %p151, %p152
      %p154 = scmp.ne.s32.totalorder %s142, %s143
      %p155 = scmp.eq.s32.totalorder %s28, 1
      %p156 = por %p154, %p155
      %p158 = scmp.ne.s32.totalorder %s143, %s157
      %p159 = scmp.eq.s32.totalorder %s28, 0
      %p160 = por %p158, %p159
      %s162 = sadd.s32 %s161, 1
      %p165 = scmp.eq.s32.totalorder %s22, 1
      %p166 = scmp.ne.s32.totalorder %s161, %s163
      %p167 = scmp.eq.s32.totalorder %s22, 0
      %p168 = por %p166, %p167
      %p169 = scmp.ne.s32.totalorder %s161, %s163
      %p170 = scmp.eq.s32.totalorder %s27, 1
      %p171 = por %p169, %p170
      %p172 = scmp.ne.s32.totalorder %s163, %s164
      %p173 = scmp.eq.s32.totalorder %s27, 0
      %p174 = por %p172, %p173
      %p175 = scmp.ne.s32.totalorder %s163, %s164
      %p176 = scmp.eq.s32.totalorder %s28, 1
      %p177 = por %p175, %p176
      %p179 = scmp.ne.s32.totalorder %s164, %s178
      %p180 = scmp.eq.s32.totalorder %s28, 0
      %p181 = por %p179, %p180
      %s183 = sadd.s32 %s182, 1
      %p186 = scmp.eq.s32.totalorder %s22, 1
      %p187 = scmp.ne.s32.totalorder %s182, %s184
      %p188 = scmp.eq.s32.totalorder %s22, 0
      %p189 = por %p187, %p188
      %p190 = scmp.ne.s32.totalorder %s182, %s184
      %p191 = scmp.eq.s32.totalorder %s27, 1
      %p192 = por %p190, %p191
      %p193 = scmp.ne.s32.totalorder %s184, %s185
      %p194 = scmp.eq.s32.totalorder %s27, 0
      %p195 = por %p193, %p194
      %p196 = scmp.ne.s32.totalorder %s184, %s185
      %p197 = scmp.eq.s32.totalorder %s28, 1
      %p198 = por %p196, %p197
      %p200 = scmp.ne.s32.totalorder %s185, %s199
      %p201 = scmp.eq.s32.totalorder %s28, 0
      %p202 = por %p200, %p201
      %s204 = sadd.s32 %s203, 1
      %p207 = scmp.eq.s32.totalorder %s22, 1
      %p208 = scmp.ne.s32.totalorder %s203, %s205
      %p209 = scmp.eq.s32.totalorder %s22, 0
      %p210 = por %p208, %p209
      %p211 = scmp.ne.s32.totalorder %s203, %s205
      %p212 = scmp.eq.s32.totalorder %s27, 1
      %p213 = por %p211, %p212
      %p214 = scmp.ne.s32.totalorder %s205, %s206
      %p215 = scmp.eq.s32.totalorder %s27, 0
      %p216 = por %p214, %p215
      %p217 = scmp.ne.s32.totalorder %s205, %s206
      %p218 = scmp.eq.s32.totalorder %s28, 1
      %p219 = por %p217, %p218
      %p221 = scmp.ne.s32.totalorder %s206, %s220
      %p222 = scmp.eq.s32.totalorder %s28, 0
      %p223 = por %p221, %p222
      %s224 = ssub.s32 %s22, %s29
      %p225 = scmp.eq.s32.totalorder %s224, 0
      %s227 = sadd.s32 %s226, 1
      %s228 = scalar_select %p225, %s226, %s227
      %p231 = pneg %p225
      %p232 = scmp.eq.s32.totalorder %s22, 1
      %p233 = por %p231, %p232
      %p234 = scmp.ne.s32.totalorder %s226, %s229
      %p235 = scmp.eq.s32.totalorder %s22, 0
      %p236 = por %p234, %p235
      %p237 = scmp.ne.s32.totalorder %s226, %s229
      %p238 = scmp.eq.s32.totalorder %s27, 1
      %p239 = por %p237, %p238
      %p240 = scmp.ne.s32.totalorder %s229, %s230
      %p241 = scmp.eq.s32.totalorder %s27, 0
      %p242 = por %p240, %p241
      %p243 = scmp.ne.s32.totalorder %s229, %s230
      %p244 = scmp.eq.s32.totalorder %s28, 1
      %p245 = por %p243, %p244
      %p247 = scmp.ne.s32.totalorder %s230, %s246
      %p248 = scmp.eq.s32.totalorder %s28, 0
      %p249 = por %p247, %p248
      %p250 = scmp.le.s32.totalorder 1, %s22
      %p251 = scmp.lt.s32.totalorder %s22, 3
      %p252 = pnand %p250, %p251
      %p253 = pneg %p252
      // Predicated region
      $region9: #{tpu_custom_call.1} parent=5 // pred_check
        _
      $region10: #{tpu_custom_call.1} parent=5 // pred_check_branch
        %255 = sbr.rel (%p252) target = $region12
      $region11: #{tpu_custom_call.1} parent=5 // pred_region
        %s256 = ssub.s32 %s22, 1
        // Predicated region
        $region13: #{tpu_custom_call.1} parent=11 // pred_check
          %p257 = pneg %p69
        $region14: #{tpu_custom_call.1} parent=11 // pred_check_branch
          %259 = sbr.rel (%p257) target = $region16
        $region15: #{tpu_custom_call.1} parent=11 // pred_region
          %s261 = ssub.s32 256, 256
          %262 = vsyncadd [#allocation6], %s261
          %s263 = sshll.u32 [#allocation5], 4
          %s264 = int_to_ptr.vmem [resolvable:$true] %s263
          %269 = dma.hbm_to_vmem [thread:$0]  %s1, 256, %s264, [#allocation6], 128, 128, 8
        $region16: #{tpu_custom_call.1} parent=11 // pred_fallthru
          _
        // Predicated region
        $region17: #{tpu_custom_call.1} parent=11 // pred_check
          %p270 = pneg %p90
        $region18: #{tpu_custom_call.1} parent=11 // pred_check_branch
          %272 = sbr.rel (%p270) target = $region20
        $region19: #{tpu_custom_call.1} parent=11 // pred_region
          _
        $region20: #{tpu_custom_call.1} parent=11 // pred_fallthru
          _
        // Predicated region
        $region21: #{tpu_custom_call.1} parent=11 // pred_check
          %p273 = pneg %p111
        $region22: #{tpu_custom_call.1} parent=11 // pred_check_branch
          %275 = sbr.rel (%p273) target = $region24
        $region23: #{tpu_custom_call.1} parent=11 // pred_region
          _
        $region24: #{tpu_custom_call.1} parent=11 // pred_fallthru
          _
        // Predicated region
        $region25: #{tpu_custom_call.1} parent=11 // pred_check
          %p276 = pneg %p132
        $region26: #{tpu_custom_call.1} parent=11 // pred_check_branch
          %278 = sbr.rel (%p276) target = $region28
        $region27: #{tpu_custom_call.1} parent=11 // pred_region
          %s280 = ssub.s32 512, 512
          %281 = vsyncadd [#allocation6], %s280
          %s282 = sshll.u32 [#allocation7], 4
          %s283 = int_to_ptr.vmem [resolvable:$true] %s282
          %288 = dma.hbm_to_vmem [thread:$0]  %s4, 512, %s283, [#allocation6], 128, 128, 8
        $region28: #{tpu_custom_call.1} parent=11 // pred_fallthru
          _
        // Predicated region
        $region29: #{tpu_custom_call.1} parent=11 // pred_check
          %p289 = pneg %p153
        $region30: #{tpu_custom_call.1} parent=11 // pred_check_branch
          %291 = sbr.rel (%p289) target = $region32
        $region31: #{tpu_custom_call.1} parent=11 // pred_region
          _
        $region32: #{tpu_custom_call.1} parent=11 // pred_fallthru
          _
        // Predicated region
        $region33: #{tpu_custom_call.1} parent=11 // pred_check
          %p292 = pneg %p174
        $region34: #{tpu_custom_call.1} parent=11 // pred_check_branch
          %294 = sbr.rel (%p292) target = $region36
        $region35: #{tpu_custom_call.1} parent=11 // pred_region
          _
        $region36: #{tpu_custom_call.1} parent=11 // pred_fallthru
          _
        // Predicated region
        $region37: #{tpu_custom_call.1} parent=11 // pred_check
          %p295 = pneg %p195
        $region38: #{tpu_custom_call.1} parent=11 // pred_check_branch
          %297 = sbr.rel (%p295) target = $region40
        $region39: #{tpu_custom_call.1} parent=11 // pred_region
          _
        $region40: #{tpu_custom_call.1} parent=11 // pred_fallthru
          _
        // Predicated region
        $region41: #{tpu_custom_call.1} parent=11 // pred_check
          %p298 = pneg %p216
        $region42: #{tpu_custom_call.1} parent=11 // pred_check_branch
          %300 = sbr.rel (%p298) target = $region44
        $region43: #{tpu_custom_call.1} parent=11 // pred_region
          _
        $region44: #{tpu_custom_call.1} parent=11 // pred_fallthru
          _
      $region12: #{tpu_custom_call.1} parent=5 // pred_fallthru
        _
      %p301 = scmp.lt.s32.totalorder %s22, 2
      // Predicated region
      $region45: #{tpu_custom_call.1} parent=5 // pred_check
        %p302 = pneg %p301
      $region46: #{tpu_custom_call.1} parent=5 // pred_check_branch
        %304 = sbr.rel (%p302) target = $region48
      $region47: #{tpu_custom_call.1} parent=5 // pred_region
        // Predicated region
        $region49: #{tpu_custom_call.1} parent=47 // pred_check
          %p305 = pneg %p42
        $region50: #{tpu_custom_call.1} parent=47 // pred_check_branch
          %307 = sbr.rel (%p305) target = $region52
        $region51: #{tpu_custom_call.1} parent=47 // pred_region
          %s308 = sand.u32 %s32, 1
          %s309 = scalar_lea.sflag [#allocation3], %s308
          %s310 = sand.u32 %s32, 1
          %s311 = smul.addr %s310, 32
          %s312 = scalar_lea.vmem [#allocation2], %s311
          %s313 = smul.u32 4, %s22
          %s315 = ssub.s32 512, 512
          %316 = vsyncadd %s309, %s315
          %s317 = smul.addr %s313, 128
          %s318 = scalar_lea.hbm %s0, %s317
          %s319 = sshll.u32 %s312, 4
          %s320 = int_to_ptr.vmem [resolvable:$true] %s319
          %325 = dma.hbm_to_vmem [thread:$0]  %s318, 512, %s320, %s309, 128, 128, 8
        $region52: #{tpu_custom_call.1} parent=47 // pred_fallthru
          _
      $region48: #{tpu_custom_call.1} parent=5 // pred_fallthru
        _
      %p326 = scmp.le.s32.totalorder 1, %s22
      %p327 = scmp.lt.s32.totalorder %s22, 3
      %p328 = pnand %p326, %p327
      %p329 = pneg %p328
      // Predicated region
      $region53: #{tpu_custom_call.1} parent=5 // pred_check
        _
      $region54: #{tpu_custom_call.1} parent=5 // pred_check_branch
        %331 = sbr.rel (%p328) target = $region56
      $region55: #{tpu_custom_call.1} parent=5 // pred_region
        %s332 = ssub.s32 %s22, 1
        %s333 = sand.u32 %s35, 1
        %s334 = scalar_lea.sflag [#allocation3], %s333
        %s335 = sand.u32 %s35, 1
        %s336 = smul.addr %s335, 32
        %s337 = scalar_lea.vmem [#allocation2], %s336
        // Predicated region
        $region57: #{tpu_custom_call.1} parent=55 // pred_check
          %p338 = pneg %p48
        $region58: #{tpu_custom_call.1} parent=55 // pred_check_branch
          %340 = sbr.rel (%p338) target = $region60
        $region59: #{tpu_custom_call.1} parent=55 // pred_region
          %341 = dma.done %s334, 512
        $region60: #{tpu_custom_call.1} parent=55 // pred_fallthru
          _
        // Predicated region
        $region61: #{tpu_custom_call.1} parent=55 // pred_check
          %p342 = pneg %p69
        $region62: #{tpu_custom_call.1} parent=55 // pred_check_branch
          %344 = sbr.rel (%p342) target = $region64
        $region63: #{tpu_custom_call.1} parent=55 // pred_region
          %345 = dma.done [#allocation6], 256
        $region64: #{tpu_custom_call.1} parent=55 // pred_fallthru
          _
        // Predicated region
        $region65: #{tpu_custom_call.1} parent=55 // pred_check
          %p346 = pneg %p132
        $region66: #{tpu_custom_call.1} parent=55 // pred_check_branch
          %348 = sbr.rel (%p346) target = $region68
        $region67: #{tpu_custom_call.1} parent=55 // pred_region
          %349 = dma.done [#allocation6], 512
        $region68: #{tpu_custom_call.1} parent=55 // pred_fallthru
          _
        %s350 = sand.u32 %s35, 1
        %s351 = scalar_lea.sflag [#allocation3], %s350
        %s352 = sand.u32 %s35, 1
        %s353 = smul.addr %s352, 32
        %s354 = scalar_lea.vmem [#allocation2], %s353
        %p355 = pneg %p48
        %p356 = pneg %p45
        %p357 = pneg %p69
        %p358 = pneg %p66
        %p359 = pneg %p90
        %p360 = pneg %p87
        %p361 = pneg %p111
        %p362 = pneg %p108
        %p363 = pneg %p132
        %p364 = pneg %p129
        %p365 = pneg %p153
        %p366 = pneg %p150
        %p367 = pneg %p174
        %p368 = pneg %p171
        %p369 = pneg %p195
        %p370 = pneg %p192
        %p371 = pneg %p216
        %p372 = pneg %p213
        %p373 = pneg %p242
        %p374 = pneg %p239
        %s375 = sand.u32 %s229, 1
        %s376 = scalar_lea.sflag [#allocation4], %s375
        %s377 = sand.u32 %s229, 1
        %s378 = smul.addr %s377, 4
        %s379 = scalar_lea.vmem [#allocation8], %s378
        %s380 = smul.u32 4, %s27
        %s381 = smul.u32 4, %s27
        %v382 = vld [vmem:[%s2] sm:$0xff]
        %v383 = vld [vmem:[%s2 + $0x8] sm:$0xff]
        %v384 = vld [vmem:[%s2 + $0x10] sm:$0xff]
        %v385 = vld [vmem:[%s2 + $0x18] sm:$0xff]
        %v386 = vld [vmem:[#allocation7] sm:$0xff]
        %v387 = vld [vmem:[#allocation7 + $0x8] sm:$0xff]
        %v388 = vld [vmem:[#allocation7 + $0x10] sm:$0xff]
        %v389 = vld [vmem:[#allocation7 + $0x18] sm:$0xff]
        %v390 = vld [vmem:[%s5] sm:$0xff]
        %v391 = vld [vmem:[%s5 + $0x8] sm:$0xff]
        %v392 = vld [vmem:[%s5 + $0x10] sm:$0xff]
        %v393 = vld [vmem:[%s5 + $0x18] sm:$0xff]
        %v394 = vld [vmem:[%s6] sm:$0x1]
        %v395 = vld [vmem:[%s337] sm:$0xff]
        %v396 = vld [vmem:[%s337 + $0x8] sm:$0xff]
        %v397 = vld [vmem:[%s337 + $0x10] sm:$0xff]
        %v398 = vld [vmem:[%s337 + $0x18] sm:$0xff]
        %v399 = vld [vmem:[#allocation5] sm:$0xff]
        %v400 = vld [vmem:[#allocation5 + $0x8] sm:$0xff]
        %v401 = vld [vmem:[%s3] sm:$0x1]
        %v403 = vlaneseq
        %v404 = vshrl.u32 %v403, 7
        %v405 = vsub.s32 0, %v404
        %v406 = vrot.slane %v401, %v405
        %vm408 = vcmask 130048
        %v410 = vsel %vm408, %v395, 0
        %v413 = vsel %vm408, %v396, 0
        %v416 = vsel %vm408, %v397, 0
        %v419 = vsel %vm408, %v398, 0
        %421 = vmatprep.subr.mxu0 0.0
        %422 = vmatpush1.msra.mxu0 %v399
        %423 = vmatprep.subr.mxu0 0.0
        %424 = vmatpush1.msra.mxu0 %v400
        %425 = vmatprep.subr.mxu0 0.0
        %426 = vmatpush1.msra.mxu0 0.0
        %427 = vmatprep.subr.mxu0 0.0
        %428 = vmatpush1.msra.mxu0 0.0
        %429 = vmatprep.subr.mxu0 0.0
        %430 = vmatpush1.msra.mxu0 0.0
        %431 = vmatprep.subr.mxu0 0.0
        %432 = vmatpush1.msra.mxu0 0.0
        %433 = vmatprep.subr.mxu0 0.0
        %434 = vmatpush1.msra.mxu0 0.0
        %435 = vmatprep.subr.mxu0 0.0
        %436 = vmatpush1.msra.mxu0 0.0
        %437 = vmatprep.subr.mxu0 0.0
        %438 = vmatpush1.msra.mxu0 0.0
        %439 = vmatprep.subr.mxu0 0.0
        %440 = vmatpush1.msra.mxu0 0.0
        %441 = vmatprep.subr.mxu0 0.0
        %442 = vmatpush1.msra.mxu0 0.0
        %443 = vmatprep.subr.mxu0 0.0
        %444 = vmatpush1.msra.mxu0 0.0
        %445 = vmatprep.subr.mxu0 0.0
        %446 = vmatpush1.msra.mxu0 0.0
        %447 = vmatprep.subr.mxu0 0.0
        %448 = vmatpush1.msra.mxu0 0.0
        %449 = vmatprep.subr.mxu0 0.0
        %450 = vmatpush1.msra.mxu0 0.0
        %451 = vmatprep.subr.mxu0 0.0
        %452 = vmatpush1.msra.mxu0 0.0
        %453 = vmatprep.subr.mxu0 0.0
        %454 = vmatpush1.msra.mxu0 0.0
        %455 = vmatprep.subr.mxu0 0.0
        %456 = vmatpush1.msra.mxu0 0.0
        %457 = vmatprep.subr.mxu0 0.0
        %458 = vmatpush1.msra.mxu0 0.0
        %459 = vmatprep.subr.mxu0 0.0
        %460 = vmatpush1.msra.mxu0 0.0
        %461 = vmatprep.subr.mxu0 0.0
        %462 = vmatpush1.msra.mxu0 0.0
        %463 = vmatprep.subr.mxu0 0.0
        %464 = vmatpush1.msra.mxu0 0.0
        %465 = vmatprep.subr.mxu0 0.0
        %466 = vmatpush1.msra.mxu0 0.0
        %467 = vmatprep.subr.mxu0 0.0
        %468 = vmatpush1.msra.mxu0 0.0
        %469 = vmatprep.subr.mxu0 0.0
        %470 = vmatpush1.msra.mxu0 0.0
        %471 = vmatprep.subr.mxu0 0.0
        %472 = vmatpush1.msra.mxu0 0.0
        %473 = vmatprep.subr.mxu0 0.0
        %474 = vmatpush1.msra.mxu0 0.0
        %475 = vmatprep.subr.mxu0 0.0
        %476 = vmatpush1.msra.mxu0 0.0
        %477 = vmatprep.subr.mxu0 0.0
        %478 = vmatpush1.msra.mxu0 0.0
        %479 = vmatprep.subr.mxu0 0.0
        %480 = vmatpush1.msra.mxu0 0.0
        %481 = vmatprep.subr.mxu0 0.0
        %482 = vmatpush1.msra.mxu0 0.0
        %483 = vmatprep.subr.mxu0 0.0
        %484 = vmatpush1.msra.mxu0 0.0
        %485 = vmatprep.mubr.f32.mxu0 0.0
        %486 = vmatmul.mubr.f32.gmra.mrb[0].mxu0 %v410
        %v487 = vpop.f32.mrb[0].mxu0
        %v488 = vadd.f32 %v406, %v487
        %v489 = vpop.f32.mrb[0].mxu0
        %490 = vmatprep.mubr.f32.mxu0 0.0
        %491 = vmatmul.mubr.f32.gmra.mrb[0].mxu0 %v413
        %v492 = vpop.f32.mrb[0].mxu0
        %v493 = vadd.f32 %v406, %v492
        %v494 = vpop.f32.mrb[0].mxu0
        %495 = vmatprep.mubr.f32.mxu0 0.0
        %496 = vmatmul.mubr.f32.gmra.mrb[0].mxu0 %v416
        %v497 = vpop.f32.mrb[0].mxu0
        %v498 = vadd.f32 %v406, %v497
        %v499 = vpop.f32.mrb[0].mxu0
        %500 = vmatprep.mubr.f32.mxu0 0.0
        %501 = vmatmul.mubr.f32.gmra.mrb[0].mxu0 %v419
        %v502 = vpop.f32.mrb[0].mxu0
        %v503 = vadd.f32 %v406, %v502
        %v504 = vpop.f32.mrb[0].mxu0
        %505 = vdwg.mxu0
        %vm506 = vcmask 261120
        %v508 = vsel %vm506, 0.0, 0
        %510 = vmatprep.subr.mxu0 0.0
        %511 = vmatpush1.msra.mxu0 %v382
        %512 = vmatprep.subr.mxu0 0.0
        %513 = vmatpush1.msra.mxu0 %v383
        %514 = vmatprep.subr.mxu0 0.0
        %515 = vmatpush1.msra.mxu0 %v384
        %516 = vmatprep.subr.mxu0 0.0
        %517 = vmatpush1.msra.mxu0 %v385
        %518 = vmatprep.subr.mxu0 0.0
        %519 = vmatpush1.msra.mxu0 0.0
        %520 = vmatprep.subr.mxu0 0.0
        %521 = vmatpush1.msra.mxu0 0.0
        %522 = vmatprep.subr.mxu0 0.0
        %523 = vmatpush1.msra.mxu0 0.0
        %524 = vmatprep.subr.mxu0 0.0
        %525 = vmatpush1.msra.mxu0 0.0
        %526 = vmatprep.subr.mxu0 0.0
        %527 = vmatpush1.msra.mxu0 0.0
        %528 = vmatprep.subr.mxu0 0.0
        %529 = vmatpush1.msra.mxu0 0.0
        %530 = vmatprep.subr.mxu0 0.0
        %531 = vmatpush1.msra.mxu0 0.0
        %532 = vmatprep.subr.mxu0 0.0
        %533 = vmatpush1.msra.mxu0 0.0
        %534 = vmatprep.subr.mxu0 0.0
        %535 = vmatpush1.msra.mxu0 0.0
        %536 = vmatprep.subr.mxu0 0.0
        %537 = vmatpush1.msra.mxu0 0.0
        %538 = vmatprep.subr.mxu0 0.0
        %539 = vmatpush1.msra.mxu0 0.0
        %540 = vmatprep.subr.mxu0 0.0
        %541 = vmatpush1.msra.mxu0 0.0
        %542 = vmatprep.subr.mxu0 0.0
        %543 = vmatpush1.msra.mxu0 0.0
        %544 = vmatprep.subr.mxu0 0.0
        %545 = vmatpush1.msra.mxu0 0.0
        %546 = vmatprep.subr.mxu0 0.0
        %547 = vmatpush1.msra.mxu0 0.0
        %548 = vmatprep.subr.mxu0 0.0
        %549 = vmatpush1.msra.mxu0 0.0
        %550 = vmatprep.subr.mxu0 0.0
        %551 = vmatpush1.msra.mxu0 0.0
        %552 = vmatprep.subr.mxu0 0.0
        %553 = vmatpush1.msra.mxu0 0.0
        %554 = vmatprep.subr.mxu0 0.0
        %555 = vmatpush1.msra.mxu0 0.0
        %556 = vmatprep.subr.mxu0 0.0
        %557 = vmatpush1.msra.mxu0 0.0
        %558 = vmatprep.subr.mxu0 0.0
        %559 = vmatpush1.msra.mxu0 0.0
        %560 = vmatprep.subr.mxu0 0.0
        %561 = vmatpush1.msra.mxu0 0.0
        %562 = vmatprep.subr.mxu0 0.0
        %563 = vmatpush1.msra.mxu0 0.0
        %564 = vmatprep.subr.mxu0 0.0
        %565 = vmatpush1.msra.mxu0 0.0
        %566 = vmatprep.subr.mxu0 0.0
        %567 = vmatpush1.msra.mxu0 0.0
        %568 = vmatprep.subr.mxu0 0.0
        %569 = vmatpush1.msra.mxu0 0.0
        %570 = vmatprep.subr.mxu0 0.0
        %571 = vmatpush1.msra.mxu0 0.0
        %572 = vmatprep.subr.mxu0 0.0
        %573 = vmatpush1.msra.mxu0 0.0
        %574 = vmatprep.mubr.f32.mxu0 0.0
        %575 = vmatmul.mubr.f32.gmra.mrb[0].mxu0 %v508
        %v576 = vpop.f32.mrb[0].mxu0
        %v577 = vadd.f32 0.0, %v576
        %v578 = vpop.f32.mrb[0].mxu0
        %579 = vdwg.mxu0
        %v581 = vrot.slane %v577, 1
        %v582 = vrot.slane %v577, 2
        %v583 = vrot.slane %v577, 3
        %v588 = vadd.f32 %v488, %v577
        %v589 = vadd.f32 %v493, %v581
        %v590 = vadd.f32 %v498, %v582
        %v591 = vadd.f32 %v503, %v583
        %v592 = vtanh.pop %v588
        %v593 = vtanh.pop %v589
        %v594 = vtanh.pop %v590
        %v595 = vtanh.pop %v591
        %596 = vmatprep.subr.mxu0 0.0
        %597 = vmatpush1.msra.mxu0 %v390
        %598 = vmatprep.subr.mxu0 0.0
        %599 = vmatpush1.msra.mxu0 %v391
        %600 = vmatprep.subr.mxu0 0.0
        %601 = vmatpush1.msra.mxu0 %v392
        %602 = vmatprep.subr.mxu0 0.0
        %603 = vmatpush1.msra.mxu0 %v393
        %604 = vmatprep.subr.mxu0 0.0
        %605 = vmatpush1.msra.mxu0 0.0
        %606 = vmatprep.subr.mxu0 0.0
        %607 = vmatpush1.msra.mxu0 0.0
        %608 = vmatprep.subr.mxu0 0.0
        %609 = vmatpush1.msra.mxu0 0.0
        %610 = vmatprep.subr.mxu0 0.0
        %611 = vmatpush1.msra.mxu0 0.0
        %612 = vmatprep.subr.mxu0 0.0
        %613 = vmatpush1.msra.mxu0 0.0
        %614 = vmatprep.subr.mxu0 0.0
        %615 = vmatpush1.msra.mxu0 0.0
        %616 = vmatprep.subr.mxu0 0.0
        %617 = vmatpush1.msra.mxu0 0.0
        %618 = vmatprep.subr.mxu0 0.0
        %619 = vmatpush1.msra.mxu0 0.0
        %620 = vmatprep.subr.mxu0 0.0
        %621 = vmatpush1.msra.mxu0 0.0
        %622 = vmatprep.subr.mxu0 0.0
        %623 = vmatpush1.msra.mxu0 0.0
        %624 = vmatprep.subr.mxu0 0.0
        %625 = vmatpush1.msra.mxu0 0.0
        %626 = vmatprep.subr.mxu0 0.0
        %627 = vmatpush1.msra.mxu0 0.0
        %628 = vmatprep.subr.mxu0 0.0
        %629 = vmatpush1.msra.mxu0 0.0
        %630 = vmatprep.subr.mxu0 0.0
        %631 = vmatpush1.msra.mxu0 0.0
        %632 = vmatprep.subr.mxu0 0.0
        %633 = vmatpush1.msra.mxu0 0.0
        %634 = vmatprep.subr.mxu0 0.0
        %635 = vmatpush1.msra.mxu0 0.0
        %636 = vmatprep.subr.mxu0 0.0
        %637 = vmatpush1.msra.mxu0 0.0
        %638 = vmatprep.subr.mxu0 0.0
        %639 = vmatpush1.msra.mxu0 0.0
        %640 = vmatprep.subr.mxu0 0.0
        %641 = vmatpush1.msra.mxu0 0.0
        %642 = vmatprep.subr.mxu0 0.0
        %643 = vmatpush1.msra.mxu0 0.0
        %644 = vmatprep.subr.mxu0 0.0
        %645 = vmatpush1.msra.mxu0 0.0
        %646 = vmatprep.subr.mxu0 0.0
        %647 = vmatpush1.msra.mxu0 0.0
        %648 = vmatprep.subr.mxu0 0.0
        %649 = vmatpush1.msra.mxu0 0.0
        %650 = vmatprep.subr.mxu0 0.0
        %651 = vmatpush1.msra.mxu0 0.0
        %652 = vmatprep.subr.mxu0 0.0
        %653 = vmatpush1.msra.mxu0 0.0
        %654 = vmatprep.subr.mxu0 0.0
        %655 = vmatpush1.msra.mxu0 0.0
        %656 = vmatprep.subr.mxu0 0.0
        %657 = vmatpush1.msra.mxu0 0.0
        %658 = vmatprep.subr.mxu0 0.0
        %659 = vmatpush1.msra.mxu0 0.0
        %660 = vmatprep.mubr.f32.mxu0 0.0
        %661 = vmatmul.mubr.f32.gmra.mrb[0].mxu0 %v508
        %v662 = vpop.f32.mrb[0].mxu0
        %v663 = vadd.f32 0.0, %v662
        %v664 = vpop.f32.mrb[0].mxu0
        %665 = vdwg.mxu0
        %v670 = vrot.slane %v593, 7
        %vm671 = vcmask 1041409
        %v672 = vsel %vm671, %v670, %v592
        %v673 = vrot.slane %v594, 6
        %vm674 = vcmask 1042434
        %v675 = vsel %vm674, %v673, %v672
        %v676 = vrot.slane %v595, 5
        %vm677 = vcmask 1043459
        %v678 = vsel %vm677, %v676, %v675
        %v679 = vsel %vm506, %v678, 0
        %681 = vmatprep.subr.mxu0 0.0
        %682 = vmatpush1.msra.mxu0 %v386
        %683 = vmatprep.subr.mxu0 0.0
        %684 = vmatpush1.msra.mxu0 %v387
        %685 = vmatprep.subr.mxu0 0.0
        %686 = vmatpush1.msra.mxu0 %v388
        %687 = vmatprep.subr.mxu0 0.0
        %688 = vmatpush1.msra.mxu0 %v389
        %689 = vmatprep.subr.mxu0 0.0
        %690 = vmatpush1.msra.mxu0 0.0
        %691 = vmatprep.subr.mxu0 0.0
        %692 = vmatpush1.msra.mxu0 0.0
        %693 = vmatprep.subr.mxu0 0.0
        %694 = vmatpush1.msra.mxu0 0.0
        %695 = vmatprep.subr.mxu0 0.0
        %696 = vmatpush1.msra.mxu0 0.0
        %697 = vmatprep.subr.mxu0 0.0
        %698 = vmatpush1.msra.mxu0 0.0
        %699 = vmatprep.subr.mxu0 0.0
        %700 = vmatpush1.msra.mxu0 0.0
        %701 = vmatprep.subr.mxu0 0.0
        %702 = vmatpush1.msra.mxu0 0.0
        %703 = vmatprep.subr.mxu0 0.0
        %704 = vmatpush1.msra.mxu0 0.0
        %705 = vmatprep.subr.mxu0 0.0
        %706 = vmatpush1.msra.mxu0 0.0
        %707 = vmatprep.subr.mxu0 0.0
        %708 = vmatpush1.msra.mxu0 0.0
        %709 = vmatprep.subr.mxu0 0.0
        %710 = vmatpush1.msra.mxu0 0.0
        %711 = vmatprep.subr.mxu0 0.0
        %712 = vmatpush1.msra.mxu0 0.0
        %713 = vmatprep.subr.mxu0 0.0
        %714 = vmatpush1.msra.mxu0 0.0
        %715 = vmatprep.subr.mxu0 0.0
        %716 = vmatpush1.msra.mxu0 0.0
        %717 = vmatprep.subr.mxu0 0.0
        %718 = vmatpush1.msra.mxu0 0.0
        %719 = vmatprep.subr.mxu0 0.0
        %720 = vmatpush1.msra.mxu0 0.0
        %721 = vmatprep.subr.mxu0 0.0
        %722 = vmatpush1.msra.mxu0 0.0
        %723 = vmatprep.subr.mxu0 0.0
        %724 = vmatpush1.msra.mxu0 0.0
        %725 = vmatprep.subr.mxu0 0.0
        %726 = vmatpush1.msra.mxu0 0.0
        %727 = vmatprep.subr.mxu0 0.0
        %728 = vmatpush1.msra.mxu0 0.0
        %729 = vmatprep.subr.mxu0 0.0
        %730 = vmatpush1.msra.mxu0 0.0
        %731 = vmatprep.subr.mxu0 0.0
        %732 = vmatpush1.msra.mxu0 0.0
        %733 = vmatprep.subr.mxu0 0.0
        %734 = vmatpush1.msra.mxu0 0.0
        %735 = vmatprep.subr.mxu0 0.0
        %736 = vmatpush1.msra.mxu0 0.0
        %737 = vmatprep.subr.mxu0 0.0
        %738 = vmatpush1.msra.mxu0 0.0
        %739 = vmatprep.subr.mxu0 0.0
        %740 = vmatpush1.msra.mxu0 0.0
        %741 = vmatprep.subr.mxu0 0.0
        %742 = vmatpush1.msra.mxu0 0.0
        %743 = vmatprep.subr.mxu0 0.0
        %744 = vmatpush1.msra.mxu0 0.0
        %745 = vmatprep.mubr.f32.mxu0 0.0
        %746 = vmatmul.mubr.f32.gmra.mrb[0].mxu0 %v679
        %v747 = vpop.f32.mrb[0].mxu0
        %v748 = vadd.f32 %v663, %v747
        %v749 = vpop.f32.mrb[0].mxu0
        %750 = vdwg.mxu0
        %v752 = vlaneseq
        %v753 = vshrl.u32 %v752, 7
        %v754 = vsub.s32 0, %v753
        %v755 = vrot.slane %v394, %v754
        %v757 = vadd.f32 %v748, %v755
        %v758 = vtanh.pop %v757
        %759 = vmatprep.subr.mxu0 0.0
        %760 = vmatpush1.msra.mxu0 %v382
        %761 = vmatprep.subr.mxu0 0.0
        %762 = vmatpush1.msra.mxu0 %v383
        %763 = vmatprep.subr.mxu0 0.0
        %764 = vmatpush1.msra.mxu0 %v384
        %765 = vmatprep.subr.mxu0 0.0
        %766 = vmatpush1.msra.mxu0 %v385
        %767 = vmatprep.subr.mxu0 0.0
        %768 = vmatpush1.msra.mxu0 0.0
        %769 = vmatprep.subr.mxu0 0.0
        %770 = vmatpush1.msra.mxu0 0.0
        %771 = vmatprep.subr.mxu0 0.0
        %772 = vmatpush1.msra.mxu0 0.0
        %773 = vmatprep.subr.mxu0 0.0
        %774 = vmatpush1.msra.mxu0 0.0
        %775 = vmatprep.subr.mxu0 0.0
        %776 = vmatpush1.msra.mxu0 0.0
        %777 = vmatprep.subr.mxu0 0.0
        %778 = vmatpush1.msra.mxu0 0.0
        %779 = vmatprep.subr.mxu0 0.0
        %780 = vmatpush1.msra.mxu0 0.0
        %781 = vmatprep.subr.mxu0 0.0
        %782 = vmatpush1.msra.mxu0 0.0
        %783 = vmatprep.subr.mxu0 0.0
        %784 = vmatpush1.msra.mxu0 0.0
        %785 = vmatprep.subr.mxu0 0.0
        %786 = vmatpush1.msra.mxu0 0.0
        %787 = vmatprep.subr.mxu0 0.0
        %788 = vmatpush1.msra.mxu0 0.0
        %789 = vmatprep.subr.mxu0 0.0
        %790 = vmatpush1.msra.mxu0 0.0
        %791 = vmatprep.subr.mxu0 0.0
        %792 = vmatpush1.msra.mxu0 0.0
        %793 = vmatprep.subr.mxu0 0.0
        %794 = vmatpush1.msra.mxu0 0.0
        %795 = vmatprep.subr.mxu0 0.0
        %796 = vmatpush1.msra.mxu0 0.0
        %797 = vmatprep.subr.mxu0 0.0
        %798 = vmatpush1.msra.mxu0 0.0
        %799 = vmatprep.subr.mxu0 0.0
        %800 = vmatpush1.msra.mxu0 0.0
        %801 = vmatprep.subr.mxu0 0.0
        %802 = vmatpush1.msra.mxu0 0.0
        %803 = vmatprep.subr.mxu0 0.0
        %804 = vmatpush1.msra.mxu0 0.0
        %805 = vmatprep.subr.mxu0 0.0
        %806 = vmatpush1.msra.mxu0 0.0
        %807 = vmatprep.subr.mxu0 0.0
        %808 = vmatpush1.msra.mxu0 0.0
        %809 = vmatprep.subr.mxu0 0.0
        %810 = vmatpush1.msra.mxu0 0.0
        %811 = vmatprep.subr.mxu0 0.0
        %812 = vmatpush1.msra.mxu0 0.0
        %813 = vmatprep.subr.mxu0 0.0
        %814 = vmatpush1.msra.mxu0 0.0
        %815 = vmatprep.subr.mxu0 0.0
        %816 = vmatpush1.msra.mxu0 0.0
        %817 = vmatprep.subr.mxu0 0.0
        %818 = vmatpush1.msra.mxu0 0.0
        %819 = vmatprep.subr.mxu0 0.0
        %820 = vmatpush1.msra.mxu0 0.0
        %821 = vmatprep.subr.mxu0 0.0
        %822 = vmatpush1.msra.mxu0 0.0
        %823 = vmatprep.mubr.f32.mxu0 0.0
        %824 = vmatmul.mubr.f32.gmra.mrb[0].mxu0 %v679
        %v825 = vpop.f32.mrb[0].mxu0
        %v826 = vadd.f32 0.0, %v825
        %v827 = vpop.f32.mrb[0].mxu0
        %828 = vdwg.mxu0
        %v830 = vrot.slane %v826, 7
        %v831 = vrot.slane %v826, 1
        %v832 = vrot.slane %v826, 2
        %v837 = vadd.f32 %v488, %v830
        %v838 = vadd.f32 %v493, %v826
        %v839 = vadd.f32 %v498, %v831
        %v840 = vadd.f32 %v503, %v832
        %v841 = vtanh.pop %v837
        %v842 = vtanh.pop %v838
        %v843 = vtanh.pop %v839
        %v844 = vtanh.pop %v840
        %v846 = vsel %vm506, %v758, 0
        %848 = vmatprep.subr.mxu0 0.0
        %849 = vmatpush1.msra.mxu0 %v390
        %850 = vmatprep.subr.mxu0 0.0
        %851 = vmatpush1.msra.mxu0 %v391
        %852 = vmatprep.subr.mxu0 0.0
        %853 = vmatpush1.msra.mxu0 %v392
        %854 = vmatprep.subr.mxu0 0.0
        %855 = vmatpush1.msra.mxu0 %v393
        %856 = vmatprep.subr.mxu0 0.0
        %857 = vmatpush1.msra.mxu0 0.0
        %858 = vmatprep.subr.mxu0 0.0
        %859 = vmatpush1.msra.mxu0 0.0
        %860 = vmatprep.subr.mxu0 0.0
        %861 = vmatpush1.msra.mxu0 0.0
        %862 = vmatprep.subr.mxu0 0.0
        %863 = vmatpush1.msra.mxu0 0.0
        %864 = vmatprep.subr.mxu0 0.0
        %865 = vmatpush1.msra.mxu0 0.0
        %866 = vmatprep.subr.mxu0 0.0
        %867 = vmatpush1.msra.mxu0 0.0
        %868 = vmatprep.subr.mxu0 0.0
        %869 = vmatpush1.msra.mxu0 0.0
        %870 = vmatprep.subr.mxu0 0.0
        %871 = vmatpush1.msra.mxu0 0.0
        %872 = vmatprep.subr.mxu0 0.0
        %873 = vmatpush1.msra.mxu0 0.0
        %874 = vmatprep.subr.mxu0 0.0
        %875 = vmatpush1.msra.mxu0 0.0
        %876 = vmatprep.subr.mxu0 0.0
        %877 = vmatpush1.msra.mxu0 0.0
        %878 = vmatprep.subr.mxu0 0.0
        %879 = vmatpush1.msra.mxu0 0.0
        %880 = vmatprep.subr.mxu0 0.0
        %881 = vmatpush1.msra.mxu0 0.0
        %882 = vmatprep.subr.mxu0 0.0
        %883 = vmatpush1.msra.mxu0 0.0
        %884 = vmatprep.subr.mxu0 0.0
        %885 = vmatpush1.msra.mxu0 0.0
        %886 = vmatprep.subr.mxu0 0.0
        %887 = vmatpush1.msra.mxu0 0.0
        %888 = vmatprep.subr.mxu0 0.0
        %889 = vmatpush1.msra.mxu0 0.0
        %890 = vmatprep.subr.mxu0 0.0
        %891 = vmatpush1.msra.mxu0 0.0
        %892 = vmatprep.subr.mxu0 0.0
        %893 = vmatpush1.msra.mxu0 0.0
        %894 = vmatprep.subr.mxu0 0.0
        %895 = vmatpush1.msra.mxu0 0.0
        %896 = vmatprep.subr.mxu0 0.0
        %897 = vmatpush1.msra.mxu0 0.0
        %898 = vmatprep.subr.mxu0 0.0
        %899 = vmatpush1.msra.mxu0 0.0
        %900 = vmatprep.subr.mxu0 0.0
        %901 = vmatpush1.msra.mxu0 0.0
        %902 = vmatprep.subr.mxu0 0.0
        %903 = vmatpush1.msra.mxu0 0.0
        %904 = vmatprep.subr.mxu0 0.0
        %905 = vmatpush1.msra.mxu0 0.0
        %906 = vmatprep.subr.mxu0 0.0
        %907 = vmatpush1.msra.mxu0 0.0
        %908 = vmatprep.subr.mxu0 0.0
        %909 = vmatpush1.msra.mxu0 0.0
        %910 = vmatprep.subr.mxu0 0.0
        %911 = vmatpush1.msra.mxu0 0.0
        %912 = vmatprep.mubr.f32.mxu0 0.0
        %913 = vmatmul.mubr.f32.gmra.mrb[0].mxu0 %v846
        %v914 = vpop.f32.mrb[0].mxu0
        %v915 = vadd.f32 0.0, %v914
        %v916 = vpop.f32.mrb[0].mxu0
        %917 = vdwg.mxu0
        %v922 = vrot.slane %v841, 1
        %v923 = vsel %vm671, %v842, %v922
        %v924 = vrot.slane %v843, 7
        %v925 = vsel %vm674, %v924, %v923
        %v926 = vrot.slane %v844, 6
        %v927 = vsel %vm677, %v926, %v925
        %v928 = vsel %vm506, %v927, 0
        %930 = vmatprep.subr.mxu0 0.0
        %931 = vmatpush1.msra.mxu0 %v386
        %932 = vmatprep.subr.mxu0 0.0
        %933 = vmatpush1.msra.mxu0 %v387
        %934 = vmatprep.subr.mxu0 0.0
        %935 = vmatpush1.msra.mxu0 %v388
        %936 = vmatprep.subr.mxu0 0.0
        %937 = vmatpush1.msra.mxu0 %v389
        %938 = vmatprep.subr.mxu0 0.0
        %939 = vmatpush1.msra.mxu0 0.0
        %940 = vmatprep.subr.mxu0 0.0
        %941 = vmatpush1.msra.mxu0 0.0
        %942 = vmatprep.subr.mxu0 0.0
        %943 = vmatpush1.msra.mxu0 0.0
        %944 = vmatprep.subr.mxu0 0.0
        %945 = vmatpush1.msra.mxu0 0.0
        %946 = vmatprep.subr.mxu0 0.0
        %947 = vmatpush1.msra.mxu0 0.0
        %948 = vmatprep.subr.mxu0 0.0
        %949 = vmatpush1.msra.mxu0 0.0
        %950 = vmatprep.subr.mxu0 0.0
        %951 = vmatpush1.msra.mxu0 0.0
        %952 = vmatprep.subr.mxu0 0.0
        %953 = vmatpush1.msra.mxu0 0.0
        %954 = vmatprep.subr.mxu0 0.0
        %955 = vmatpush1.msra.mxu0 0.0
        %956 = vmatprep.subr.mxu0 0.0
        %957 = vmatpush1.msra.mxu0 0.0
        %958 = vmatprep.subr.mxu0 0.0
        %959 = vmatpush1.msra.mxu0 0.0
        %960 = vmatprep.subr.mxu0 0.0
        %961 = vmatpush1.msra.mxu0 0.0
        %962 = vmatprep.subr.mxu0 0.0
        %963 = vmatpush1.msra.mxu0 0.0
        %964 = vmatprep.subr.mxu0 0.0
        %965 = vmatpush1.msra.mxu0 0.0
        %966 = vmatprep.subr.mxu0 0.0
        %967 = vmatpush1.msra.mxu0 0.0
        %968 = vmatprep.subr.mxu0 0.0
        %969 = vmatpush1.msra.mxu0 0.0
        %970 = vmatprep.subr.mxu0 0.0
        %971 = vmatpush1.msra.mxu0 0.0
        %972 = vmatprep.subr.mxu0 0.0
        %973 = vmatpush1.msra.mxu0 0.0
        %974 = vmatprep.subr.mxu0 0.0
        %975 = vmatpush1.msra.mxu0 0.0
        %976 = vmatprep.subr.mxu0 0.0
        %977 = vmatpush1.msra.mxu0 0.0
        %978 = vmatprep.subr.mxu0 0.0
        %979 = vmatpush1.msra.mxu0 0.0
        %980 = vmatprep.subr.mxu0 0.0
        %981 = vmatpush1.msra.mxu0 0.0
        %982 = vmatprep.subr.mxu0 0.0
        %983 = vmatpush1.msra.mxu0 0.0
        %984 = vmatprep.subr.mxu0 0.0
        %985 = vmatpush1.msra.mxu0 0.0
        %986 = vmatprep.subr.mxu0 0.0
        %987 = vmatpush1.msra.mxu0 0.0
        %988 = vmatprep.subr.mxu0 0.0
        %989 = vmatpush1.msra.mxu0 0.0
        %990 = vmatprep.subr.mxu0 0.0
        %991 = vmatpush1.msra.mxu0 0.0
        %992 = vmatprep.subr.mxu0 0.0
        %993 = vmatpush1.msra.mxu0 0.0
        %994 = vmatprep.mubr.f32.mxu0 0.0
        %995 = vmatmul.mubr.f32.gmra.mrb[0].mxu0 %v928
        %v996 = vpop.f32.mrb[0].mxu0
        %v997 = vadd.f32 %v915, %v996
        %v998 = vpop.f32.mrb[0].mxu0
        %999 = vdwg.mxu0
        %v1000 = vadd.f32 %v997, %v755
        %v1001 = vtanh.pop %v1000
        %1002 = vmatprep.subr.mxu0 0.0
        %1003 = vmatpush1.msra.mxu0 %v382
        %1004 = vmatprep.subr.mxu0 0.0
        %1005 = vmatpush1.msra.mxu0 %v383
        %1006 = vmatprep.subr.mxu0 0.0
        %1007 = vmatpush1.msra.mxu0 %v384
        %1008 = vmatprep.subr.mxu0 0.0
        %1009 = vmatpush1.msra.mxu0 %v385
        %1010 = vmatprep.subr.mxu0 0.0
        %1011 = vmatpush1.msra.mxu0 0.0
        %1012 = vmatprep.subr.mxu0 0.0
        %1013 = vmatpush1.msra.mxu0 0.0
        %1014 = vmatprep.subr.mxu0 0.0
        %1015 = vmatpush1.msra.mxu0 0.0
        %1016 = vmatprep.subr.mxu0 0.0
        %1017 = vmatpush1.msra.mxu0 0.0
        %1018 = vmatprep.subr.mxu0 0.0
        %1019 = vmatpush1.msra.mxu0 0.0
        %1020 = vmatprep.subr.mxu0 0.0
        %1021 = vmatpush1.msra.mxu0 0.0
        %1022 = vmatprep.subr.mxu0 0.0
        %1023 = vmatpush1.msra.mxu0 0.0
        %1024 = vmatprep.subr.mxu0 0.0
        %1025 = vmatpush1.msra.mxu0 0.0
        %1026 = vmatprep.subr.mxu0 0.0
        %1027 = vmatpush1.msra.mxu0 0.0
        %1028 = vmatprep.subr.mxu0 0.0
        %1029 = vmatpush1.msra.mxu0 0.0
        %1030 = vmatprep.subr.mxu0 0.0
        %1031 = vmatpush1.msra.mxu0 0.0
        %1032 = vmatprep.subr.mxu0 0.0
        %1033 = vmatpush1.msra.mxu0 0.0
        %1034 = vmatprep.subr.mxu0 0.0
        %1035 = vmatpush1.msra.mxu0 0.0
        %1036 = vmatprep.subr.mxu0 0.0
        %1037 = vmatpush1.msra.mxu0 0.0
        %1038 = vmatprep.subr.mxu0 0.0
        %1039 = vmatpush1.msra.mxu0 0.0
        %1040 = vmatprep.subr.mxu0 0.0
        %1041 = vmatpush1.msra.mxu0 0.0
        %1042 = vmatprep.subr.mxu0 0.0
        %1043 = vmatpush1.msra.mxu0 0.0
        %1044 = vmatprep.subr.mxu0 0.0
        %1045 = vmatpush1.msra.mxu0 0.0
        %1046 = vmatprep.subr.mxu0 0.0
        %1047 = vmatpush1.msra.mxu0 0.0
        %1048 = vmatprep.subr.mxu0 0.0
        %1049 = vmatpush1.msra.mxu0 0.0
        %1050 = vmatprep.subr.mxu0 0.0
        %1051 = vmatpush1.msra.mxu0 0.0
        %1052 = vmatprep.subr.mxu0 0.0
        %1053 = vmatpush1.msra.mxu0 0.0
        %1054 = vmatprep.subr.mxu0 0.0
        %1055 = vmatpush1.msra.mxu0 0.0
        %1056 = vmatprep.subr.mxu0 0.0
        %1057 = vmatpush1.msra.mxu0 0.0
        %1058 = vmatprep.subr.mxu0 0.0
        %1059 = vmatpush1.msra.mxu0 0.0
        %1060 = vmatprep.subr.mxu0 0.0
        %1061 = vmatpush1.msra.mxu0 0.0
        %1062 = vmatprep.subr.mxu0 0.0
        %1063 = vmatpush1.msra.mxu0 0.0
        %1064 = vmatprep.subr.mxu0 0.0
        %1065 = vmatpush1.msra.mxu0 0.0
        %1066 = vmatprep.mubr.f32.mxu0 0.0
        %1067 = vmatmul.mubr.f32.gmra.mrb[0].mxu0 %v928
        %v1068 = vpop.f32.mrb[0].mxu0
        %v1069 = vadd.f32 0.0, %v1068
        %v1070 = vpop.f32.mrb[0].mxu0
        %1071 = vdwg.mxu0
        %v1073 = vrot.slane %v1069, 6
        %v1074 = vrot.slane %v1069, 7
        %v1075 = vrot.slane %v1069, 1
        %v1080 = vadd.f32 %v488, %v1073
        %v1081 = vadd.f32 %v493, %v1074
        %v1082 = vadd.f32 %v498, %v1069
        %v1083 = vadd.f32 %v503, %v1075
        %v1084 = vtanh.pop %v1080
        %v1085 = vtanh.pop %v1081
        %v1086 = vtanh.pop %v1082
        %v1087 = vtanh.pop %v1083
        %v1089 = vsel %vm506, %v1001, 0
        %1091 = vmatprep.subr.mxu0 0.0
        %1092 = vmatpush1.msra.mxu0 %v390
        %1093 = vmatprep.subr.mxu0 0.0
        %1094 = vmatpush1.msra.mxu0 %v391
        %1095 = vmatprep.subr.mxu0 0.0
        %1096 = vmatpush1.msra.mxu0 %v392
        %1097 = vmatprep.subr.mxu0 0.0
        %1098 = vmatpush1.msra.mxu0 %v393
        %1099 = vmatprep.subr.mxu0 0.0
        %1100 = vmatpush1.msra.mxu0 0.0
        %1101 = vmatprep.subr.mxu0 0.0
        %1102 = vmatpush1.msra.mxu0 0.0
        %1103 = vmatprep.subr.mxu0 0.0
        %1104 = vmatpush1.msra.mxu0 0.0
        %1105 = vmatprep.subr.mxu0 0.0
        %1106 = vmatpush1.msra.mxu0 0.0
        %1107 = vmatprep.subr.mxu0 0.0
        %1108 = vmatpush1.msra.mxu0 0.0
        %1109 = vmatprep.subr.mxu0 0.0
        %1110 = vmatpush1.msra.mxu0 0.0
        %1111 = vmatprep.subr.mxu0 0.0
        %1112 = vmatpush1.msra.mxu0 0.0
        %1113 = vmatprep.subr.mxu0 0.0
        %1114 = vmatpush1.msra.mxu0 0.0
        %1115 = vmatprep.subr.mxu0 0.0
        %1116 = vmatpush1.msra.mxu0 0.0
        %1117 = vmatprep.subr.mxu0 0.0
        %1118 = vmatpush1.msra.mxu0 0.0
        %1119 = vmatprep.subr.mxu0 0.0
        %1120 = vmatpush1.msra.mxu0 0.0
        %1121 = vmatprep.subr.mxu0 0.0
        %1122 = vmatpush1.msra.mxu0 0.0
        %1123 = vmatprep.subr.mxu0 0.0
        %1124 = vmatpush1.msra.mxu0 0.0
        %1125 = vmatprep.subr.mxu0 0.0
        %1126 = vmatpush1.msra.mxu0 0.0
        %1127 = vmatprep.subr.mxu0 0.0
        %1128 = vmatpush1.msra.mxu0 0.0
        %1129 = vmatprep.subr.mxu0 0.0
        %1130 = vmatpush1.msra.mxu0 0.0
        %1131 = vmatprep.subr.mxu0 0.0
        %1132 = vmatpush1.msra.mxu0 0.0
        %1133 = vmatprep.subr.mxu0 0.0
        %1134 = vmatpush1.msra.mxu0 0.0
        %1135 = vmatprep.subr.mxu0 0.0
        %1136 = vmatpush1.msra.mxu0 0.0
        %1137 = vmatprep.subr.mxu0 0.0
        %1138 = vmatpush1.msra.mxu0 0.0
        %1139 = vmatprep.subr.mxu0 0.0
        %1140 = vmatpush1.msra.mxu0 0.0
        %1141 = vmatprep.subr.mxu0 0.0
        %1142 = vmatpush1.msra.mxu0 0.0
        %1143 = vmatprep.subr.mxu0 0.0
        %1144 = vmatpush1.msra.mxu0 0.0
        %1145 = vmatprep.subr.mxu0 0.0
        %1146 = vmatpush1.msra.mxu0 0.0
        %1147 = vmatprep.subr.mxu0 0.0
        %1148 = vmatpush1.msra.mxu0 0.0
        %1149 = vmatprep.subr.mxu0 0.0
        %1150 = vmatpush1.msra.mxu0 0.0
        %1151 = vmatprep.subr.mxu0 0.0
        %1152 = vmatpush1.msra.mxu0 0.0
        %1153 = vmatprep.subr.mxu0 0.0
        %1154 = vmatpush1.msra.mxu0 0.0
        %1155 = vmatprep.mubr.f32.mxu0 0.0
        %1156 = vmatmul.mubr.f32.gmra.mrb[0].mxu0 %v1089
        %v1157 = vpop.f32.mrb[0].mxu0
        %v1158 = vadd.f32 0.0, %v1157
        %v1159 = vpop.f32.mrb[0].mxu0
        %1160 = vdwg.mxu0
        %v1165 = vrot.slane %v1084, 2
        %v1166 = vrot.slane %v1085, 1
        %v1167 = vsel %vm671, %v1166, %v1165
        %v1168 = vsel %vm674, %v1086, %v1167
        %v1169 = vrot.slane %v1087, 7
        %v1170 = vsel %vm677, %v1169, %v1168
        %v1171 = vsel %vm506, %v1170, 0
        %1173 = vmatprep.subr.mxu0 0.0
        %1174 = vmatpush1.msra.mxu0 %v386
        %1175 = vmatprep.subr.mxu0 0.0
        %1176 = vmatpush1.msra.mxu0 %v387
        %1177 = vmatprep.subr.mxu0 0.0
        %1178 = vmatpush1.msra.mxu0 %v388
        %1179 = vmatprep.subr.mxu0 0.0
        %1180 = vmatpush1.msra.mxu0 %v389
        %1181 = vmatprep.subr.mxu0 0.0
        %1182 = vmatpush1.msra.mxu0 0.0
        %1183 = vmatprep.subr.mxu0 0.0
        %1184 = vmatpush1.msra.mxu0 0.0
        %1185 = vmatprep.subr.mxu0 0.0
        %1186 = vmatpush1.msra.mxu0 0.0
        %1187 = vmatprep.subr.mxu0 0.0
        %1188 = vmatpush1.msra.mxu0 0.0
        %1189 = vmatprep.subr.mxu0 0.0
        %1190 = vmatpush1.msra.mxu0 0.0
        %1191 = vmatprep.subr.mxu0 0.0
        %1192 = vmatpush1.msra.mxu0 0.0
        %1193 = vmatprep.subr.mxu0 0.0
        %1194 = vmatpush1.msra.mxu0 0.0
        %1195 = vmatprep.subr.mxu0 0.0
        %1196 = vmatpush1.msra.mxu0 0.0
        %1197 = vmatprep.subr.mxu0 0.0
        %1198 = vmatpush1.msra.mxu0 0.0
        %1199 = vmatprep.subr.mxu0 0.0
        %1200 = vmatpush1.msra.mxu0 0.0
        %1201 = vmatprep.subr.mxu0 0.0
        %1202 = vmatpush1.msra.mxu0 0.0
        %1203 = vmatprep.subr.mxu0 0.0
        %1204 = vmatpush1.msra.mxu0 0.0
        %1205 = vmatprep.subr.mxu0 0.0
        %1206 = vmatpush1.msra.mxu0 0.0
        %1207 = vmatprep.subr.mxu0 0.0
        %1208 = vmatpush1.msra.mxu0 0.0
        %1209 = vmatprep.subr.mxu0 0.0
        %1210 = vmatpush1.msra.mxu0 0.0
        %1211 = vmatprep.subr.mxu0 0.0
        %1212 = vmatpush1.msra.mxu0 0.0
        %1213 = vmatprep.subr.mxu0 0.0
        %1214 = vmatpush1.msra.mxu0 0.0
        %1215 = vmatprep.subr.mxu0 0.0
        %1216 = vmatpush1.msra.mxu0 0.0
        %1217 = vmatprep.subr.mxu0 0.0
        %1218 = vmatpush1.msra.mxu0 0.0
        %1219 = vmatprep.subr.mxu0 0.0
        %1220 = vmatpush1.msra.mxu0 0.0
        %1221 = vmatprep.subr.mxu0 0.0
        %1222 = vmatpush1.msra.mxu0 0.0
        %1223 = vmatprep.subr.mxu0 0.0
        %1224 = vmatpush1.msra.mxu0 0.0
        %1225 = vmatprep.subr.mxu0 0.0
        %1226 = vmatpush1.msra.mxu0 0.0
        %1227 = vmatprep.subr.mxu0 0.0
        %1228 = vmatpush1.msra.mxu0 0.0
        %1229 = vmatprep.subr.mxu0 0.0
        %1230 = vmatpush1.msra.mxu0 0.0
        %1231 = vmatprep.subr.mxu0 0.0
        %1232 = vmatpush1.msra.mxu0 0.0
        %1233 = vmatprep.subr.mxu0 0.0
        %1234 = vmatpush1.msra.mxu0 0.0
        %1235 = vmatprep.subr.mxu0 0.0
        %1236 = vmatpush1.msra.mxu0 0.0
        %1237 = vmatprep.mubr.f32.mxu0 0.0
        %1238 = vmatmul.mubr.f32.gmra.mrb[0].mxu0 %v1171
        %v1239 = vpop.f32.mrb[0].mxu0
        %v1240 = vadd.f32 %v1158, %v1239
        %v1241 = vpop.f32.mrb[0].mxu0
        %1242 = vdwg.mxu0
        %v1243 = vadd.f32 %v1240, %v755
        %v1244 = vtanh.pop %v1243
        %1245 = vmatprep.subr.mxu0 0.0
        %1246 = vmatpush1.msra.mxu0 %v382
        %1247 = vmatprep.subr.mxu0 0.0
        %1248 = vmatpush1.msra.mxu0 %v383
        %1249 = vmatprep.subr.mxu0 0.0
        %1250 = vmatpush1.msra.mxu0 %v384
        %1251 = vmatprep.subr.mxu0 0.0
        %1252 = vmatpush1.msra.mxu0 %v385
        %1253 = vmatprep.subr.mxu0 0.0
        %1254 = vmatpush1.msra.mxu0 0.0
        %1255 = vmatprep.subr.mxu0 0.0
        %1256 = vmatpush1.msra.mxu0 0.0
        %1257 = vmatprep.subr.mxu0 0.0
        %1258 = vmatpush1.msra.mxu0 0.0
        %1259 = vmatprep.subr.mxu0 0.0
        %1260 = vmatpush1.msra.mxu0 0.0
        %1261 = vmatprep.subr.mxu0 0.0
        %1262 = vmatpush1.msra.mxu0 0.0
        %1263 = vmatprep.subr.mxu0 0.0
        %1264 = vmatpush1.msra.mxu0 0.0
        %1265 = vmatprep.subr.mxu0 0.0
        %1266 = vmatpush1.msra.mxu0 0.0
        %1267 = vmatprep.subr.mxu0 0.0
        %1268 = vmatpush1.msra.mxu0 0.0
        %1269 = vmatprep.subr.mxu0 0.0
        %1270 = vmatpush1.msra.mxu0 0.0
        %1271 = vmatprep.subr.mxu0 0.0
        %1272 = vmatpush1.msra.mxu0 0.0
        %1273 = vmatprep.subr.mxu0 0.0
        %1274 = vmatpush1.msra.mxu0 0.0
        %1275 = vmatprep.subr.mxu0 0.0
        %1276 = vmatpush1.msra.mxu0 0.0
        %1277 = vmatprep.subr.mxu0 0.0
        %1278 = vmatpush1.msra.mxu0 0.0
        %1279 = vmatprep.subr.mxu0 0.0
        %1280 = vmatpush1.msra.mxu0 0.0
        %1281 = vmatprep.subr.mxu0 0.0
        %1282 = vmatpush1.msra.mxu0 0.0
        %1283 = vmatprep.subr.mxu0 0.0
        %1284 = vmatpush1.msra.mxu0 0.0
        %1285 = vmatprep.subr.mxu0 0.0
        %1286 = vmatpush1.msra.mxu0 0.0
        %1287 = vmatprep.subr.mxu0 0.0
        %1288 = vmatpush1.msra.mxu0 0.0
        %1289 = vmatprep.subr.mxu0 0.0
        %1290 = vmatpush1.msra.mxu0 0.0
        %1291 = vmatprep.subr.mxu0 0.0
        %1292 = vmatpush1.msra.mxu0 0.0
        %1293 = vmatprep.subr.mxu0 0.0
        %1294 = vmatpush1.msra.mxu0 0.0
        %1295 = vmatprep.subr.mxu0 0.0
        %1296 = vmatpush1.msra.mxu0 0.0
        %1297 = vmatprep.subr.mxu0 0.0
        %1298 = vmatpush1.msra.mxu0 0.0
        %1299 = vmatprep.subr.mxu0 0.0
        %1300 = vmatpush1.msra.mxu0 0.0
        %1301 = vmatprep.subr.mxu0 0.0
        %1302 = vmatpush1.msra.mxu0 0.0
        %1303 = vmatprep.subr.mxu0 0.0
        %1304 = vmatpush1.msra.mxu0 0.0
        %1305 = vmatprep.subr.mxu0 0.0
        %1306 = vmatpush1.msra.mxu0 0.0
        %1307 = vmatprep.subr.mxu0 0.0
        %1308 = vmatpush1.msra.mxu0 0.0
        %1309 = vmatprep.mubr.f32.mxu0 0.0
        %1310 = vmatmul.mubr.f32.gmra.mrb[0].mxu0 %v1171
        %v1311 = vpop.f32.mrb[0].mxu0
        %v1312 = vadd.f32 0.0, %v1311
        %v1313 = vpop.f32.mrb[0].mxu0
        %1314 = vdwg.mxu0
        %v1316 = vrot.slane %v1312, 5
        %v1317 = vrot.slane %v1312, 6
        %v1318 = vrot.slane %v1312, 7
        %v1323 = vadd.f32 %v488, %v1316
        %v1324 = vadd.f32 %v493, %v1317
        %v1325 = vadd.f32 %v498, %v1318
        %v1326 = vadd.f32 %v503, %v1312
        %v1327 = vtanh.pop %v1323
        %v1328 = vtanh.pop %v1324
        %v1329 = vtanh.pop %v1325
        %v1330 = vtanh.pop %v1326
        %v1332 = vsel %vm506, %v1244, 0
        %1334 = vmatprep.subr.mxu0 0.0
        %1335 = vmatpush1.msra.mxu0 %v390
        %1336 = vmatprep.subr.mxu0 0.0
        %1337 = vmatpush1.msra.mxu0 %v391
        %1338 = vmatprep.subr.mxu0 0.0
        %1339 = vmatpush1.msra.mxu0 %v392
        %1340 = vmatprep.subr.mxu0 0.0
        %1341 = vmatpush1.msra.mxu0 %v393
        %1342 = vmatprep.subr.mxu0 0.0
        %1343 = vmatpush1.msra.mxu0 0.0
        %1344 = vmatprep.subr.mxu0 0.0
        %1345 = vmatpush1.msra.mxu0 0.0
        %1346 = vmatprep.subr.mxu0 0.0
        %1347 = vmatpush1.msra.mxu0 0.0
        %1348 = vmatprep.subr.mxu0 0.0
        %1349 = vmatpush1.msra.mxu0 0.0
        %1350 = vmatprep.subr.mxu0 0.0
        %1351 = vmatpush1.msra.mxu0 0.0
        %1352 = vmatprep.subr.mxu0 0.0
        %1353 = vmatpush1.msra.mxu0 0.0
        %1354 = vmatprep.subr.mxu0 0.0
        %1355 = vmatpush1.msra.mxu0 0.0
        %1356 = vmatprep.subr.mxu0 0.0
        %1357 = vmatpush1.msra.mxu0 0.0
        %1358 = vmatprep.subr.mxu0 0.0
        %1359 = vmatpush1.msra.mxu0 0.0
        %1360 = vmatprep.subr.mxu0 0.0
        %1361 = vmatpush1.msra.mxu0 0.0
        %1362 = vmatprep.subr.mxu0 0.0
        %1363 = vmatpush1.msra.mxu0 0.0
        %1364 = vmatprep.subr.mxu0 0.0
        %1365 = vmatpush1.msra.mxu0 0.0
        %1366 = vmatprep.subr.mxu0 0.0
        %1367 = vmatpush1.msra.mxu0 0.0
        %1368 = vmatprep.subr.mxu0 0.0
        %1369 = vmatpush1.msra.mxu0 0.0
        %1370 = vmatprep.subr.mxu0 0.0
        %1371 = vmatpush1.msra.mxu0 0.0
        %1372 = vmatprep.subr.mxu0 0.0
        %1373 = vmatpush1.msra.mxu0 0.0
        %1374 = vmatprep.subr.mxu0 0.0
        %1375 = vmatpush1.msra.mxu0 0.0
        %1376 = vmatprep.subr.mxu0 0.0
        %1377 = vmatpush1.msra.mxu0 0.0
        %1378 = vmatprep.subr.mxu0 0.0
        %1379 = vmatpush1.msra.mxu0 0.0
        %1380 = vmatprep.subr.mxu0 0.0
        %1381 = vmatpush1.msra.mxu0 0.0
        %1382 = vmatprep.subr.mxu0 0.0
        %1383 = vmatpush1.msra.mxu0 0.0
        %1384 = vmatprep.subr.mxu0 0.0
        %1385 = vmatpush1.msra.mxu0 0.0
        %1386 = vmatprep.subr.mxu0 0.0
        %1387 = vmatpush1.msra.mxu0 0.0
        %1388 = vmatprep.subr.mxu0 0.0
        %1389 = vmatpush1.msra.mxu0 0.0
        %1390 = vmatprep.subr.mxu0 0.0
        %1391 = vmatpush1.msra.mxu0 0.0
        %1392 = vmatprep.subr.mxu0 0.0
        %1393 = vmatpush1.msra.mxu0 0.0
        %1394 = vmatprep.subr.mxu0 0.0
        %1395 = vmatpush1.msra.mxu0 0.0
        %1396 = vmatprep.subr.mxu0 0.0
        %1397 = vmatpush1.msra.mxu0 0.0
        %1398 = vmatprep.mubr.f32.mxu0 0.0
        %1399 = vmatmul.mubr.f32.gmra.mrb[0].mxu0 %v1332
        %v1400 = vpop.f32.mrb[0].mxu0
        %v1401 = vadd.f32 0.0, %v1400
        %v1402 = vpop.f32.mrb[0].mxu0
        %1403 = vdwg.mxu0
        %v1408 = vrot.slane %v1327, 3
        %v1409 = vrot.slane %v1328, 2
        %v1410 = vsel %vm671, %v1409, %v1408
        %v1411 = vrot.slane %v1329, 1
        %v1412 = vsel %vm674, %v1411, %v1410
        %v1413 = vsel %vm677, %v1330, %v1412
        %v1414 = vsel %vm506, %v1413, 0
        %1416 = vmatprep.subr.mxu0 0.0
        %1417 = vmatpush1.msra.mxu0 %v386
        %1418 = vmatprep.subr.mxu0 0.0
        %1419 = vmatpush1.msra.mxu0 %v387
        %1420 = vmatprep.subr.mxu0 0.0
        %1421 = vmatpush1.msra.mxu0 %v388
        %1422 = vmatprep.subr.mxu0 0.0
        %1423 = vmatpush1.msra.mxu0 %v389
        %1424 = vmatprep.subr.mxu0 0.0
        %1425 = vmatpush1.msra.mxu0 0.0
        %1426 = vmatprep.subr.mxu0 0.0
        %1427 = vmatpush1.msra.mxu0 0.0
        %1428 = vmatprep.subr.mxu0 0.0
        %1429 = vmatpush1.msra.mxu0 0.0
        %1430 = vmatprep.subr.mxu0 0.0
        %1431 = vmatpush1.msra.mxu0 0.0
        %1432 = vmatprep.subr.mxu0 0.0
        %1433 = vmatpush1.msra.mxu0 0.0
        %1434 = vmatprep.subr.mxu0 0.0
        %1435 = vmatpush1.msra.mxu0 0.0
        %1436 = vmatprep.subr.mxu0 0.0
        %1437 = vmatpush1.msra.mxu0 0.0
        %1438 = vmatprep.subr.mxu0 0.0
        %1439 = vmatpush1.msra.mxu0 0.0
        %1440 = vmatprep.subr.mxu0 0.0
        %1441 = vmatpush1.msra.mxu0 0.0
        %1442 = vmatprep.subr.mxu0 0.0
        %1443 = vmatpush1.msra.mxu0 0.0
        %1444 = vmatprep.subr.mxu0 0.0
        %1445 = vmatpush1.msra.mxu0 0.0
        %1446 = vmatprep.subr.mxu0 0.0
        %1447 = vmatpush1.msra.mxu0 0.0
        %1448 = vmatprep.subr.mxu0 0.0
        %1449 = vmatpush1.msra.mxu0 0.0
        %1450 = vmatprep.subr.mxu0 0.0
        %1451 = vmatpush1.msra.mxu0 0.0
        %1452 = vmatprep.subr.mxu0 0.0
        %1453 = vmatpush1.msra.mxu0 0.0
        %1454 = vmatprep.subr.mxu0 0.0
        %1455 = vmatpush1.msra.mxu0 0.0
        %1456 = vmatprep.subr.mxu0 0.0
        %1457 = vmatpush1.msra.mxu0 0.0
        %1458 = vmatprep.subr.mxu0 0.0
        %1459 = vmatpush1.msra.mxu0 0.0
        %1460 = vmatprep.subr.mxu0 0.0
        %1461 = vmatpush1.msra.mxu0 0.0
        %1462 = vmatprep.subr.mxu0 0.0
        %1463 = vmatpush1.msra.mxu0 0.0
        %1464 = vmatprep.subr.mxu0 0.0
        %1465 = vmatpush1.msra.mxu0 0.0
        %1466 = vmatprep.subr.mxu0 0.0
        %1467 = vmatpush1.msra.mxu0 0.0
        %1468 = vmatprep.subr.mxu0 0.0
        %1469 = vmatpush1.msra.mxu0 0.0
        %1470 = vmatprep.subr.mxu0 0.0
        %1471 = vmatpush1.msra.mxu0 0.0
        %1472 = vmatprep.subr.mxu0 0.0
        %1473 = vmatpush1.msra.mxu0 0.0
        %1474 = vmatprep.subr.mxu0 0.0
        %1475 = vmatpush1.msra.mxu0 0.0
        %1476 = vmatprep.subr.mxu0 0.0
        %1477 = vmatpush1.msra.mxu0 0.0
        %1478 = vmatprep.subr.mxu0 0.0
        %1479 = vmatpush1.msra.mxu0 0.0
        %1480 = vmatprep.mubr.f32.mxu0 0.0
        %1481 = vmatmul.mubr.f32.gmra.mrb[0].mxu0 %v1414
        %v1482 = vpop.f32.mrb[0].mxu0
        %v1483 = vadd.f32 %v1401, %v1482
        %v1484 = vpop.f32.mrb[0].mxu0
        %1485 = vdwg.mxu0
        %v1486 = vadd.f32 %v1483, %v755
        %v1487 = vtanh.pop %v1486
        %1488 = vmatprep.subr.mxu0 0.0
        %1489 = vmatpush1.msra.mxu0 %v382
        %1490 = vmatprep.subr.mxu0 0.0
        %1491 = vmatpush1.msra.mxu0 %v383
        %1492 = vmatprep.subr.mxu0 0.0
        %1493 = vmatpush1.msra.mxu0 %v384
        %1494 = vmatprep.subr.mxu0 0.0
        %1495 = vmatpush1.msra.mxu0 %v385
        %1496 = vmatprep.subr.mxu0 0.0
        %1497 = vmatpush1.msra.mxu0 0.0
        %1498 = vmatprep.subr.mxu0 0.0
        %1499 = vmatpush1.msra.mxu0 0.0
        %1500 = vmatprep.subr.mxu0 0.0
        %1501 = vmatpush1.msra.mxu0 0.0
        %1502 = vmatprep.subr.mxu0 0.0
        %1503 = vmatpush1.msra.mxu0 0.0
        %1504 = vmatprep.subr.mxu0 0.0
        %1505 = vmatpush1.msra.mxu0 0.0
        %1506 = vmatprep.subr.mxu0 0.0
        %1507 = vmatpush1.msra.mxu0 0.0
        %1508 = vmatprep.subr.mxu0 0.0
        %1509 = vmatpush1.msra.mxu0 0.0
        %1510 = vmatprep.subr.mxu0 0.0
        %1511 = vmatpush1.msra.mxu0 0.0
        %1512 = vmatprep.subr.mxu0 0.0
        %1513 = vmatpush1.msra.mxu0 0.0
        %1514 = vmatprep.subr.mxu0 0.0
        %1515 = vmatpush1.msra.mxu0 0.0
        %1516 = vmatprep.subr.mxu0 0.0
        %1517 = vmatpush1.msra.mxu0 0.0
        %1518 = vmatprep.subr.mxu0 0.0
        %1519 = vmatpush1.msra.mxu0 0.0
        %1520 = vmatprep.subr.mxu0 0.0
        %1521 = vmatpush1.msra.mxu0 0.0
        %1522 = vmatprep.subr.mxu0 0.0
        %1523 = vmatpush1.msra.mxu0 0.0
        %1524 = vmatprep.subr.mxu0 0.0
        %1525 = vmatpush1.msra.mxu0 0.0
        %1526 = vmatprep.subr.mxu0 0.0
        %1527 = vmatpush1.msra.mxu0 0.0
        %1528 = vmatprep.subr.mxu0 0.0
        %1529 = vmatpush1.msra.mxu0 0.0
        %1530 = vmatprep.subr.mxu0 0.0
        %1531 = vmatpush1.msra.mxu0 0.0
        %1532 = vmatprep.subr.mxu0 0.0
        %1533 = vmatpush1.msra.mxu0 0.0
        %1534 = vmatprep.subr.mxu0 0.0
        %1535 = vmatpush1.msra.mxu0 0.0
        %1536 = vmatprep.subr.mxu0 0.0
        %1537 = vmatpush1.msra.mxu0 0.0
        %1538 = vmatprep.subr.mxu0 0.0
        %1539 = vmatpush1.msra.mxu0 0.0
        %1540 = vmatprep.subr.mxu0 0.0
        %1541 = vmatpush1.msra.mxu0 0.0
        %1542 = vmatprep.subr.mxu0 0.0
        %1543 = vmatpush1.msra.mxu0 0.0
        %1544 = vmatprep.subr.mxu0 0.0
        %1545 = vmatpush1.msra.mxu0 0.0
        %1546 = vmatprep.subr.mxu0 0.0
        %1547 = vmatpush1.msra.mxu0 0.0
        %1548 = vmatprep.subr.mxu0 0.0
        %1549 = vmatpush1.msra.mxu0 0.0
        %1550 = vmatprep.subr.mxu0 0.0
        %1551 = vmatpush1.msra.mxu0 0.0
        %1552 = vmatprep.mubr.f32.mxu0 0.0
        %1553 = vmatmul.mubr.f32.gmra.mrb[0].mxu0 %v1414
        %v1554 = vpop.f32.mrb[0].mxu0
        %v1555 = vadd.f32 0.0, %v1554
        %v1556 = vpop.f32.mrb[0].mxu0
        %1557 = vdwg.mxu0
        %v1559 = vrot.slane %v1555, 4
        %v1560 = vrot.slane %v1555, 5
        %v1561 = vrot.slane %v1555, 6
        %v1562 = vrot.slane %v1555, 7
        %v1567 = vadd.f32 %v488, %v1559
        %v1568 = vadd.f32 %v493, %v1560
        %v1569 = vadd.f32 %v498, %v1561
        %v1570 = vadd.f32 %v503, %v1562
        %v1571 = vtanh.pop %v1567
        %v1572 = vtanh.pop %v1568
        %v1573 = vtanh.pop %v1569
        %v1574 = vtanh.pop %v1570
        %v1576 = vsel %vm506, %v1487, 0
        %1578 = vmatprep.subr.mxu0 0.0
        %1579 = vmatpush1.msra.mxu0 %v390
        %1580 = vmatprep.subr.mxu0 0.0
        %1581 = vmatpush1.msra.mxu0 %v391
        %1582 = vmatprep.subr.mxu0 0.0
        %1583 = vmatpush1.msra.mxu0 %v392
        %1584 = vmatprep.subr.mxu0 0.0
        %1585 = vmatpush1.msra.mxu0 %v393
        %1586 = vmatprep.subr.mxu0 0.0
        %1587 = vmatpush1.msra.mxu0 0.0
        %1588 = vmatprep.subr.mxu0 0.0
        %1589 = vmatpush1.msra.mxu0 0.0
        %1590 = vmatprep.subr.mxu0 0.0
        %1591 = vmatpush1.msra.mxu0 0.0
        %1592 = vmatprep.subr.mxu0 0.0
        %1593 = vmatpush1.msra.mxu0 0.0
        %1594 = vmatprep.subr.mxu0 0.0
        %1595 = vmatpush1.msra.mxu0 0.0
        %1596 = vmatprep.subr.mxu0 0.0
        %1597 = vmatpush1.msra.mxu0 0.0
        %1598 = vmatprep.subr.mxu0 0.0
        %1599 = vmatpush1.msra.mxu0 0.0
        %1600 = vmatprep.subr.mxu0 0.0
        %1601 = vmatpush1.msra.mxu0 0.0
        %1602 = vmatprep.subr.mxu0 0.0
        %1603 = vmatpush1.msra.mxu0 0.0
        %1604 = vmatprep.subr.mxu0 0.0
        %1605 = vmatpush1.msra.mxu0 0.0
        %1606 = vmatprep.subr.mxu0 0.0
        %1607 = vmatpush1.msra.mxu0 0.0
        %1608 = vmatprep.subr.mxu0 0.0
        %1609 = vmatpush1.msra.mxu0 0.0
        %1610 = vmatprep.subr.mxu0 0.0
        %1611 = vmatpush1.msra.mxu0 0.0
        %1612 = vmatprep.subr.mxu0 0.0
        %1613 = vmatpush1.msra.mxu0 0.0
        %1614 = vmatprep.subr.mxu0 0.0
        %1615 = vmatpush1.msra.mxu0 0.0
        %1616 = vmatprep.subr.mxu0 0.0
        %1617 = vmatpush1.msra.mxu0 0.0
        %1618 = vmatprep.subr.mxu0 0.0
        %1619 = vmatpush1.msra.mxu0 0.0
        %1620 = vmatprep.subr.mxu0 0.0
        %1621 = vmatpush1.msra.mxu0 0.0
        %1622 = vmatprep.subr.mxu0 0.0
        %1623 = vmatpush1.msra.mxu0 0.0
        %1624 = vmatprep.subr.mxu0 0.0
        %1625 = vmatpush1.msra.mxu0 0.0
        %1626 = vmatprep.subr.mxu0 0.0
        %1627 = vmatpush1.msra.mxu0 0.0
        %1628 = vmatprep.subr.mxu0 0.0
        %1629 = vmatpush1.msra.mxu0 0.0
        %1630 = vmatprep.subr.mxu0 0.0
        %1631 = vmatpush1.msra.mxu0 0.0
        %1632 = vmatprep.subr.mxu0 0.0
        %1633 = vmatpush1.msra.mxu0 0.0
        %1634 = vmatprep.subr.mxu0 0.0
        %1635 = vmatpush1.msra.mxu0 0.0
        %1636 = vmatprep.subr.mxu0 0.0
        %1637 = vmatpush1.msra.mxu0 0.0
        %1638 = vmatprep.subr.mxu0 0.0
        %1639 = vmatpush1.msra.mxu0 0.0
        %1640 = vmatprep.subr.mxu0 0.0
        %1641 = vmatpush1.msra.mxu0 0.0
        %1642 = vmatprep.mubr.f32.mxu0 0.0
        %1643 = vmatmul.mubr.f32.gmra.mrb[0].mxu0 %v1576
        %v1644 = vpop.f32.mrb[0].mxu0
        %v1645 = vadd.f32 0.0, %v1644
        %v1646 = vpop.f32.mrb[0].mxu0
        %1647 = vdwg.mxu0
        %v1652 = vrot.slane %v1571, 4
        %v1653 = vrot.slane %v1572, 3
        %v1654 = vsel %vm671, %v1653, %v1652
        %v1655 = vrot.slane %v1573, 2
        %v1656 = vsel %vm674, %v1655, %v1654
        %v1657 = vrot.slane %v1574, 1
        %v1658 = vsel %vm677, %v1657, %v1656
        %v1659 = vsel %vm506, %v1658, 0
        %1661 = vmatprep.subr.mxu0 0.0
        %1662 = vmatpush1.msra.mxu0 %v386
        %1663 = vmatprep.subr.mxu0 0.0
        %1664 = vmatpush1.msra.mxu0 %v387
        %1665 = vmatprep.subr.mxu0 0.0
        %1666 = vmatpush1.msra.mxu0 %v388
        %1667 = vmatprep.subr.mxu0 0.0
        %1668 = vmatpush1.msra.mxu0 %v389
        %1669 = vmatprep.subr.mxu0 0.0
        %1670 = vmatpush1.msra.mxu0 0.0
        %1671 = vmatprep.subr.mxu0 0.0
        %1672 = vmatpush1.msra.mxu0 0.0
        %1673 = vmatprep.subr.mxu0 0.0
        %1674 = vmatpush1.msra.mxu0 0.0
        %1675 = vmatprep.subr.mxu0 0.0
        %1676 = vmatpush1.msra.mxu0 0.0
        %1677 = vmatprep.subr.mxu0 0.0
        %1678 = vmatpush1.msra.mxu0 0.0
        %1679 = vmatprep.subr.mxu0 0.0
        %1680 = vmatpush1.msra.mxu0 0.0
        %1681 = vmatprep.subr.mxu0 0.0
        %1682 = vmatpush1.msra.mxu0 0.0
        %1683 = vmatprep.subr.mxu0 0.0
        %1684 = vmatpush1.msra.mxu0 0.0
        %1685 = vmatprep.subr.mxu0 0.0
        %1686 = vmatpush1.msra.mxu0 0.0
        %1687 = vmatprep.subr.mxu0 0.0
        %1688 = vmatpush1.msra.mxu0 0.0
        %1689 = vmatprep.subr.mxu0 0.0
        %1690 = vmatpush1.msra.mxu0 0.0
        %1691 = vmatprep.subr.mxu0 0.0
        %1692 = vmatpush1.msra.mxu0 0.0
        %1693 = vmatprep.subr.mxu0 0.0
        %1694 = vmatpush1.msra.mxu0 0.0
        %1695 = vmatprep.subr.mxu0 0.0
        %1696 = vmatpush1.msra.mxu0 0.0
        %1697 = vmatprep.subr.mxu0 0.0
        %1698 = vmatpush1.msra.mxu0 0.0
        %1699 = vmatprep.subr.mxu0 0.0
        %1700 = vmatpush1.msra.mxu0 0.0
        %1701 = vmatprep.subr.mxu0 0.0
        %1702 = vmatpush1.msra.mxu0 0.0
        %1703 = vmatprep.subr.mxu0 0.0
        %1704 = vmatpush1.msra.mxu0 0.0
        %1705 = vmatprep.subr.mxu0 0.0
        %1706 = vmatpush1.msra.mxu0 0.0
        %1707 = vmatprep.subr.mxu0 0.0
        %1708 = vmatpush1.msra.mxu0 0.0
        %1709 = vmatprep.subr.mxu0 0.0
        %1710 = vmatpush1.msra.mxu0 0.0
        %1711 = vmatprep.subr.mxu0 0.0
        %1712 = vmatpush1.msra.mxu0 0.0
        %1713 = vmatprep.subr.mxu0 0.0
        %1714 = vmatpush1.msra.mxu0 0.0
        %1715 = vmatprep.subr.mxu0 0.0
        %1716 = vmatpush1.msra.mxu0 0.0
        %1717 = vmatprep.subr.mxu0 0.0
        %1718 = vmatpush1.msra.mxu0 0.0
        %1719 = vmatprep.subr.mxu0 0.0
        %1720 = vmatpush1.msra.mxu0 0.0
        %1721 = vmatprep.subr.mxu0 0.0
        %1722 = vmatpush1.msra.mxu0 0.0
        %1723 = vmatprep.subr.mxu0 0.0
        %1724 = vmatpush1.msra.mxu0 0.0
        %1725 = vmatprep.mubr.f32.mxu0 0.0
        %1726 = vmatmul.mubr.f32.gmra.mrb[0].mxu0 %v1659
        %v1727 = vpop.f32.mrb[0].mxu0
        %v1728 = vadd.f32 %v1645, %v1727
        %v1729 = vpop.f32.mrb[0].mxu0
        %1730 = vdwg.mxu0
        %v1731 = vadd.f32 %v1728, %v755
        %v1732 = vtanh.pop %v1731
        %1733 = vmatprep.subr.mxu0 0.0
        %1734 = vmatpush1.msra.mxu0 %v382
        %1735 = vmatprep.subr.mxu0 0.0
        %1736 = vmatpush1.msra.mxu0 %v383
        %1737 = vmatprep.subr.mxu0 0.0
        %1738 = vmatpush1.msra.mxu0 %v384
        %1739 = vmatprep.subr.mxu0 0.0
        %1740 = vmatpush1.msra.mxu0 %v385
        %1741 = vmatprep.subr.mxu0 0.0
        %1742 = vmatpush1.msra.mxu0 0.0
        %1743 = vmatprep.subr.mxu0 0.0
        %1744 = vmatpush1.msra.mxu0 0.0
        %1745 = vmatprep.subr.mxu0 0.0
        %1746 = vmatpush1.msra.mxu0 0.0
        %1747 = vmatprep.subr.mxu0 0.0
        %1748 = vmatpush1.msra.mxu0 0.0
        %1749 = vmatprep.subr.mxu0 0.0
        %1750 = vmatpush1.msra.mxu0 0.0
        %1751 = vmatprep.subr.mxu0 0.0
        %1752 = vmatpush1.msra.mxu0 0.0
        %1753 = vmatprep.subr.mxu0 0.0
        %1754 = vmatpush1.msra.mxu0 0.0
        %1755 = vmatprep.subr.mxu0 0.0
        %1756 = vmatpush1.msra.mxu0 0.0
        %1757 = vmatprep.subr.mxu0 0.0
        %1758 = vmatpush1.msra.mxu0 0.0
        %1759 = vmatprep.subr.mxu0 0.0
        %1760 = vmatpush1.msra.mxu0 0.0
        %1761 = vmatprep.subr.mxu0 0.0
        %1762 = vmatpush1.msra.mxu0 0.0
        %1763 = vmatprep.subr.mxu0 0.0
        %1764 = vmatpush1.msra.mxu0 0.0
        %1765 = vmatprep.subr.mxu0 0.0
        %1766 = vmatpush1.msra.mxu0 0.0
        %1767 = vmatprep.subr.mxu0 0.0
        %1768 = vmatpush1.msra.mxu0 0.0
        %1769 = vmatprep.subr.mxu0 0.0
        %1770 = vmatpush1.msra.mxu0 0.0
        %1771 = vmatprep.subr.mxu0 0.0
        %1772 = vmatpush1.msra.mxu0 0.0
        %1773 = vmatprep.subr.mxu0 0.0
        %1774 = vmatpush1.msra.mxu0 0.0
        %1775 = vmatprep.subr.mxu0 0.0
        %1776 = vmatpush1.msra.mxu0 0.0
        %1777 = vmatprep.subr.mxu0 0.0
        %1778 = vmatpush1.msra.mxu0 0.0
        %1779 = vmatprep.subr.mxu0 0.0
        %1780 = vmatpush1.msra.mxu0 0.0
        %1781 = vmatprep.subr.mxu0 0.0
        %1782 = vmatpush1.msra.mxu0 0.0
        %1783 = vmatprep.subr.mxu0 0.0
        %1784 = vmatpush1.msra.mxu0 0.0
        %1785 = vmatprep.subr.mxu0 0.0
        %1786 = vmatpush1.msra.mxu0 0.0
        %1787 = vmatprep.subr.mxu0 0.0
        %1788 = vmatpush1.msra.mxu0 0.0
        %1789 = vmatprep.subr.mxu0 0.0
        %1790 = vmatpush1.msra.mxu0 0.0
        %1791 = vmatprep.subr.mxu0 0.0
        %1792 = vmatpush1.msra.mxu0 0.0
        %1793 = vmatprep.subr.mxu0 0.0
        %1794 = vmatpush1.msra.mxu0 0.0
        %1795 = vmatprep.subr.mxu0 0.0
        %1796 = vmatpush1.msra.mxu0 0.0
        %1797 = vmatprep.mubr.f32.mxu0 0.0
        %1798 = vmatmul.mubr.f32.gmra.mrb[0].mxu0 %v1659
        %v1799 = vpop.f32.mrb[0].mxu0
        %v1800 = vadd.f32 0.0, %v1799
        %v1801 = vpop.f32.mrb[0].mxu0
        %1802 = vdwg.mxu0
        %v1804 = vrot.slane %v1800, 3
        %v1805 = vrot.slane %v1800, 4
        %v1806 = vrot.slane %v1800, 5
        %v1807 = vrot.slane %v1800, 6
        %v1812 = vadd.f32 %v488, %v1804
        %v1813 = vadd.f32 %v493, %v1805
        %v1814 = vadd.f32 %v498, %v1806
        %v1815 = vadd.f32 %v503, %v1807
        %v1816 = vtanh.pop %v1812
        %v1817 = vtanh.pop %v1813
        %v1818 = vtanh.pop %v1814
        %v1819 = vtanh.pop %v1815
        %v1821 = vsel %vm506, %v1732, 0
        %1823 = vmatprep.subr.mxu0 0.0
        %1824 = vmatpush1.msra.mxu0 %v390
        %1825 = vmatprep.subr.mxu0 0.0
        %1826 = vmatpush1.msra.mxu0 %v391
        %1827 = vmatprep.subr.mxu0 0.0
        %1828 = vmatpush1.msra.mxu0 %v392
        %1829 = vmatprep.subr.mxu0 0.0
        %1830 = vmatpush1.msra.mxu0 %v393
        %1831 = vmatprep.subr.mxu0 0.0
        %1832 = vmatpush1.msra.mxu0 0.0
        %1833 = vmatprep.subr.mxu0 0.0
        %1834 = vmatpush1.msra.mxu0 0.0
        %1835 = vmatprep.subr.mxu0 0.0
        %1836 = vmatpush1.msra.mxu0 0.0
        %1837 = vmatprep.subr.mxu0 0.0
        %1838 = vmatpush1.msra.mxu0 0.0
        %1839 = vmatprep.subr.mxu0 0.0
        %1840 = vmatpush1.msra.mxu0 0.0
        %1841 = vmatprep.subr.mxu0 0.0
        %1842 = vmatpush1.msra.mxu0 0.0
        %1843 = vmatprep.subr.mxu0 0.0
        %1844 = vmatpush1.msra.mxu0 0.0
        %1845 = vmatprep.subr.mxu0 0.0
        %1846 = vmatpush1.msra.mxu0 0.0
        %1847 = vmatprep.subr.mxu0 0.0
        %1848 = vmatpush1.msra.mxu0 0.0
        %1849 = vmatprep.subr.mxu0 0.0
        %1850 = vmatpush1.msra.mxu0 0.0
        %1851 = vmatprep.subr.mxu0 0.0
        %1852 = vmatpush1.msra.mxu0 0.0
        %1853 = vmatprep.subr.mxu0 0.0
        %1854 = vmatpush1.msra.mxu0 0.0
        %1855 = vmatprep.subr.mxu0 0.0
        %1856 = vmatpush1.msra.mxu0 0.0
        %1857 = vmatprep.subr.mxu0 0.0
        %1858 = vmatpush1.msra.mxu0 0.0
        %1859 = vmatprep.subr.mxu0 0.0
        %1860 = vmatpush1.msra.mxu0 0.0
        %1861 = vmatprep.subr.mxu0 0.0
        %1862 = vmatpush1.msra.mxu0 0.0
        %1863 = vmatprep.subr.mxu0 0.0
        %1864 = vmatpush1.msra.mxu0 0.0
        %1865 = vmatprep.subr.mxu0 0.0
        %1866 = vmatpush1.msra.mxu0 0.0
        %1867 = vmatprep.subr.mxu0 0.0
        %1868 = vmatpush1.msra.mxu0 0.0
        %1869 = vmatprep.subr.mxu0 0.0
        %1870 = vmatpush1.msra.mxu0 0.0
        %1871 = vmatprep.subr.mxu0 0.0
        %1872 = vmatpush1.msra.mxu0 0.0
        %1873 = vmatprep.subr.mxu0 0.0
        %1874 = vmatpush1.msra.mxu0 0.0
        %1875 = vmatprep.subr.mxu0 0.0
        %1876 = vmatpush1.msra.mxu0 0.0
        %1877 = vmatprep.subr.mxu0 0.0
        %1878 = vmatpush1.msra.mxu0 0.0
        %1879 = vmatprep.subr.mxu0 0.0
        %1880 = vmatpush1.msra.mxu0 0.0
        %1881 = vmatprep.subr.mxu0 0.0
        %1882 = vmatpush1.msra.mxu0 0.0
        %1883 = vmatprep.subr.mxu0 0.0
        %1884 = vmatpush1.msra.mxu0 0.0
        %1885 = vmatprep.subr.mxu0 0.0
        %1886 = vmatpush1.msra.mxu0 0.0
        %1887 = vmatprep.mubr.f32.mxu0 0.0
        %1888 = vmatmul.mubr.f32.gmra.mrb[0].mxu0 %v1821
        %v1889 = vpop.f32.mrb[0].mxu0
        %v1890 = vadd.f32 0.0, %v1889
        %v1891 = vpop.f32.mrb[0].mxu0
        %1892 = vdwg.mxu0
        %v1897 = vrot.slane %v1816, 5
        %v1898 = vrot.slane %v1817, 4
        %v1899 = vsel %vm671, %v1898, %v1897
        %v1900 = vrot.slane %v1818, 3
        %v1901 = vsel %vm674, %v1900, %v1899
        %v1902 = vrot.slane %v1819, 2
        %v1903 = vsel %vm677, %v1902, %v1901
        %v1904 = vsel %vm506, %v1903, 0
        %1906 = vmatprep.subr.mxu0 0.0
        %1907 = vmatpush1.msra.mxu0 %v386
        %1908 = vmatprep.subr.mxu0 0.0
        %1909 = vmatpush1.msra.mxu0 %v387
        %1910 = vmatprep.subr.mxu0 0.0
        %1911 = vmatpush1.msra.mxu0 %v388
        %1912 = vmatprep.subr.mxu0 0.0
        %1913 = vmatpush1.msra.mxu0 %v389
        %1914 = vmatprep.subr.mxu0 0.0
        %1915 = vmatpush1.msra.mxu0 0.0
        %1916 = vmatprep.subr.mxu0 0.0
        %1917 = vmatpush1.msra.mxu0 0.0
        %1918 = vmatprep.subr.mxu0 0.0
        %1919 = vmatpush1.msra.mxu0 0.0
        %1920 = vmatprep.subr.mxu0 0.0
        %1921 = vmatpush1.msra.mxu0 0.0
        %1922 = vmatprep.subr.mxu0 0.0
        %1923 = vmatpush1.msra.mxu0 0.0
        %1924 = vmatprep.subr.mxu0 0.0
        %1925 = vmatpush1.msra.mxu0 0.0
        %1926 = vmatprep.subr.mxu0 0.0
        %1927 = vmatpush1.msra.mxu0 0.0
        %1928 = vmatprep.subr.mxu0 0.0
        %1929 = vmatpush1.msra.mxu0 0.0
        %1930 = vmatprep.subr.mxu0 0.0
        %1931 = vmatpush1.msra.mxu0 0.0
        %1932 = vmatprep.subr.mxu0 0.0
        %1933 = vmatpush1.msra.mxu0 0.0
        %1934 = vmatprep.subr.mxu0 0.0
        %1935 = vmatpush1.msra.mxu0 0.0
        %1936 = vmatprep.subr.mxu0 0.0
        %1937 = vmatpush1.msra.mxu0 0.0
        %1938 = vmatprep.subr.mxu0 0.0
        %1939 = vmatpush1.msra.mxu0 0.0
        %1940 = vmatprep.subr.mxu0 0.0
        %1941 = vmatpush1.msra.mxu0 0.0
        %1942 = vmatprep.subr.mxu0 0.0
        %1943 = vmatpush1.msra.mxu0 0.0
        %1944 = vmatprep.subr.mxu0 0.0
        %1945 = vmatpush1.msra.mxu0 0.0
        %1946 = vmatprep.subr.mxu0 0.0
        %1947 = vmatpush1.msra.mxu0 0.0
        %1948 = vmatprep.subr.mxu0 0.0
        %1949 = vmatpush1.msra.mxu0 0.0
        %1950 = vmatprep.subr.mxu0 0.0
        %1951 = vmatpush1.msra.mxu0 0.0
        %1952 = vmatprep.subr.mxu0 0.0
        %1953 = vmatpush1.msra.mxu0 0.0
        %1954 = vmatprep.subr.mxu0 0.0
        %1955 = vmatpush1.msra.mxu0 0.0
        %1956 = vmatprep.subr.mxu0 0.0
        %1957 = vmatpush1.msra.mxu0 0.0
        %1958 = vmatprep.subr.mxu0 0.0
        %1959 = vmatpush1.msra.mxu0 0.0
        %1960 = vmatprep.subr.mxu0 0.0
        %1961 = vmatpush1.msra.mxu0 0.0
        %1962 = vmatprep.subr.mxu0 0.0
        %1963 = vmatpush1.msra.mxu0 0.0
        %1964 = vmatprep.subr.mxu0 0.0
        %1965 = vmatpush1.msra.mxu0 0.0
        %1966 = vmatprep.subr.mxu0 0.0
        %1967 = vmatpush1.msra.mxu0 0.0
        %1968 = vmatprep.subr.mxu0 0.0
        %1969 = vmatpush1.msra.mxu0 0.0
        %1970 = vmatprep.mubr.f32.mxu0 0.0
        %1971 = vmatmul.mubr.f32.gmra.mrb[0].mxu0 %v1904
        %v1972 = vpop.f32.mrb[0].mxu0
        %v1973 = vadd.f32 %v1890, %v1972
        %v1974 = vpop.f32.mrb[0].mxu0
        %1975 = vdwg.mxu0
        %v1976 = vadd.f32 %v1973, %v755
        %v1977 = vtanh.pop %v1976
        %1978 = vmatprep.subr.mxu0 0.0
        %1979 = vmatpush1.msra.mxu0 %v382
        %1980 = vmatprep.subr.mxu0 0.0
        %1981 = vmatpush1.msra.mxu0 %v383
        %1982 = vmatprep.subr.mxu0 0.0
        %1983 = vmatpush1.msra.mxu0 %v384
        %1984 = vmatprep.subr.mxu0 0.0
        %1985 = vmatpush1.msra.mxu0 %v385
        %1986 = vmatprep.subr.mxu0 0.0
        %1987 = vmatpush1.msra.mxu0 0.0
        %1988 = vmatprep.subr.mxu0 0.0
        %1989 = vmatpush1.msra.mxu0 0.0
        %1990 = vmatprep.subr.mxu0 0.0
        %1991 = vmatpush1.msra.mxu0 0.0
        %1992 = vmatprep.subr.mxu0 0.0
        %1993 = vmatpush1.msra.mxu0 0.0
        %1994 = vmatprep.subr.mxu0 0.0
        %1995 = vmatpush1.msra.mxu0 0.0
        %1996 = vmatprep.subr.mxu0 0.0
        %1997 = vmatpush1.msra.mxu0 0.0
        %1998 = vmatprep.subr.mxu0 0.0
        %1999 = vmatpush1.msra.mxu0 0.0
        %2000 = vmatprep.subr.mxu0 0.0
        %2001 = vmatpush1.msra.mxu0 0.0
        %2002 = vmatprep.subr.mxu0 0.0
        %2003 = vmatpush1.msra.mxu0 0.0
        %2004 = vmatprep.subr.mxu0 0.0
        %2005 = vmatpush1.msra.mxu0 0.0
        %2006 = vmatprep.subr.mxu0 0.0
        %2007 = vmatpush1.msra.mxu0 0.0
        %2008 = vmatprep.subr.mxu0 0.0
        %2009 = vmatpush1.msra.mxu0 0.0
        %2010 = vmatprep.subr.mxu0 0.0
        %2011 = vmatpush1.msra.mxu0 0.0
        %2012 = vmatprep.subr.mxu0 0.0
        %2013 = vmatpush1.msra.mxu0 0.0
        %2014 = vmatprep.subr.mxu0 0.0
        %2015 = vmatpush1.msra.mxu0 0.0
        %2016 = vmatprep.subr.mxu0 0.0
        %2017 = vmatpush1.msra.mxu0 0.0
        %2018 = vmatprep.subr.mxu0 0.0
        %2019 = vmatpush1.msra.mxu0 0.0
        %2020 = vmatprep.subr.mxu0 0.0
        %2021 = vmatpush1.msra.mxu0 0.0
        %2022 = vmatprep.subr.mxu0 0.0
        %2023 = vmatpush1.msra.mxu0 0.0
        %2024 = vmatprep.subr.mxu0 0.0
        %2025 = vmatpush1.msra.mxu0 0.0
        %2026 = vmatprep.subr.mxu0 0.0
        %2027 = vmatpush1.msra.mxu0 0.0
        %2028 = vmatprep.subr.mxu0 0.0
        %2029 = vmatpush1.msra.mxu0 0.0
        %2030 = vmatprep.subr.mxu0 0.0
        %2031 = vmatpush1.msra.mxu0 0.0
        %2032 = vmatprep.subr.mxu0 0.0
        %2033 = vmatpush1.msra.mxu0 0.0
        %2034 = vmatprep.subr.mxu0 0.0
        %2035 = vmatpush1.msra.mxu0 0.0
        %2036 = vmatprep.subr.mxu0 0.0
        %2037 = vmatpush1.msra.mxu0 0.0
        %2038 = vmatprep.subr.mxu0 0.0
        %2039 = vmatpush1.msra.mxu0 0.0
        %2040 = vmatprep.subr.mxu0 0.0
        %2041 = vmatpush1.msra.mxu0 0.0
        %2042 = vmatprep.mubr.f32.mxu0 0.0
        %2043 = vmatmul.mubr.f32.gmra.mrb[0].mxu0 %v1904
        %v2044 = vpop.f32.mrb[0].mxu0
        %v2045 = vadd.f32 0.0, %v2044
        %v2046 = vpop.f32.mrb[0].mxu0
        %2047 = vdwg.mxu0
        %v2049 = vrot.slane %v2045, 2
        %v2050 = vrot.slane %v2045, 3
        %v2051 = vrot.slane %v2045, 4
        %v2052 = vrot.slane %v2045, 5
        %v2057 = vadd.f32 %v488, %v2049
        %v2058 = vadd.f32 %v493, %v2050
        %v2059 = vadd.f32 %v498, %v2051
        %v2060 = vadd.f32 %v503, %v2052
        %v2061 = vtanh.pop %v2057
        %v2062 = vtanh.pop %v2058
        %v2063 = vtanh.pop %v2059
        %v2064 = vtanh.pop %v2060
        %v2066 = vsel %vm506, %v1977, 0
        %2068 = vmatprep.subr.mxu0 0.0
        %2069 = vmatpush1.msra.mxu0 %v390
        %2070 = vmatprep.subr.mxu0 0.0
        %2071 = vmatpush1.msra.mxu0 %v391
        %2072 = vmatprep.subr.mxu0 0.0
        %2073 = vmatpush1.msra.mxu0 %v392
        %2074 = vmatprep.subr.mxu0 0.0
        %2075 = vmatpush1.msra.mxu0 %v393
        %2076 = vmatprep.subr.mxu0 0.0
        %2077 = vmatpush1.msra.mxu0 0.0
        %2078 = vmatprep.subr.mxu0 0.0
        %2079 = vmatpush1.msra.mxu0 0.0
        %2080 = vmatprep.subr.mxu0 0.0
        %2081 = vmatpush1.msra.mxu0 0.0
        %2082 = vmatprep.subr.mxu0 0.0
        %2083 = vmatpush1.msra.mxu0 0.0
        %2084 = vmatprep.subr.mxu0 0.0
        %2085 = vmatpush1.msra.mxu0 0.0
        %2086 = vmatprep.subr.mxu0 0.0
        %2087 = vmatpush1.msra.mxu0 0.0
        %2088 = vmatprep.subr.mxu0 0.0
        %2089 = vmatpush1.msra.mxu0 0.0
        %2090 = vmatprep.subr.mxu0 0.0
        %2091 = vmatpush1.msra.mxu0 0.0
        %2092 = vmatprep.subr.mxu0 0.0
        %2093 = vmatpush1.msra.mxu0 0.0
        %2094 = vmatprep.subr.mxu0 0.0
        %2095 = vmatpush1.msra.mxu0 0.0
        %2096 = vmatprep.subr.mxu0 0.0
        %2097 = vmatpush1.msra.mxu0 0.0
        %2098 = vmatprep.subr.mxu0 0.0
        %2099 = vmatpush1.msra.mxu0 0.0
        %2100 = vmatprep.subr.mxu0 0.0
        %2101 = vmatpush1.msra.mxu0 0.0
        %2102 = vmatprep.subr.mxu0 0.0
        %2103 = vmatpush1.msra.mxu0 0.0
        %2104 = vmatprep.subr.mxu0 0.0
        %2105 = vmatpush1.msra.mxu0 0.0
        %2106 = vmatprep.subr.mxu0 0.0
        %2107 = vmatpush1.msra.mxu0 0.0
        %2108 = vmatprep.subr.mxu0 0.0
        %2109 = vmatpush1.msra.mxu0 0.0
        %2110 = vmatprep.subr.mxu0 0.0
        %2111 = vmatpush1.msra.mxu0 0.0
        %2112 = vmatprep.subr.mxu0 0.0
        %2113 = vmatpush1.msra.mxu0 0.0
        %2114 = vmatprep.subr.mxu0 0.0
        %2115 = vmatpush1.msra.mxu0 0.0
        %2116 = vmatprep.subr.mxu0 0.0
        %2117 = vmatpush1.msra.mxu0 0.0
        %2118 = vmatprep.subr.mxu0 0.0
        %2119 = vmatpush1.msra.mxu0 0.0
        %2120 = vmatprep.subr.mxu0 0.0
        %2121 = vmatpush1.msra.mxu0 0.0
        %2122 = vmatprep.subr.mxu0 0.0
        %2123 = vmatpush1.msra.mxu0 0.0
        %2124 = vmatprep.subr.mxu0 0.0
        %2125 = vmatpush1.msra.mxu0 0.0
        %2126 = vmatprep.subr.mxu0 0.0
        %2127 = vmatpush1.msra.mxu0 0.0
        %2128 = vmatprep.subr.mxu0 0.0
        %2129 = vmatpush1.msra.mxu0 0.0
        %2130 = vmatprep.subr.mxu0 0.0
        %2131 = vmatpush1.msra.mxu0 0.0
        %2132 = vmatprep.mubr.f32.mxu0 0.0
        %2133 = vmatmul.mubr.f32.gmra.mrb[0].mxu0 %v2066
        %v2134 = vpop.f32.mrb[0].mxu0
        %v2135 = vadd.f32 0.0, %v2134
        %v2136 = vpop.f32.mrb[0].mxu0
        %2137 = vdwg.mxu0
        %v2142 = vrot.slane %v2061, 6
        %v2143 = vrot.slane %v2062, 5
        %v2144 = vsel %vm671, %v2143, %v2142
        %v2145 = vrot.slane %v2063, 4
        %v2146 = vsel %vm674, %v2145, %v2144
        %v2147 = vrot.slane %v2064, 3
        %v2148 = vsel %vm677, %v2147, %v2146
        %v2149 = vsel %vm506, %v2148, 0
        %2151 = vmatprep.subr.mxu0 0.0
        %2152 = vmatpush1.msra.mxu0 %v386
        %2153 = vmatprep.subr.mxu0 0.0
        %2154 = vmatpush1.msra.mxu0 %v387
        %2155 = vmatprep.subr.mxu0 0.0
        %2156 = vmatpush1.msra.mxu0 %v388
        %2157 = vmatprep.subr.mxu0 0.0
        %2158 = vmatpush1.msra.mxu0 %v389
        %2159 = vmatprep.subr.mxu0 0.0
        %2160 = vmatpush1.msra.mxu0 0.0
        %2161 = vmatprep.subr.mxu0 0.0
        %2162 = vmatpush1.msra.mxu0 0.0
        %2163 = vmatprep.subr.mxu0 0.0
        %2164 = vmatpush1.msra.mxu0 0.0
        %2165 = vmatprep.subr.mxu0 0.0
        %2166 = vmatpush1.msra.mxu0 0.0
        %2167 = vmatprep.subr.mxu0 0.0
        %2168 = vmatpush1.msra.mxu0 0.0
        %2169 = vmatprep.subr.mxu0 0.0
        %2170 = vmatpush1.msra.mxu0 0.0
        %2171 = vmatprep.subr.mxu0 0.0
        %2172 = vmatpush1.msra.mxu0 0.0
        %2173 = vmatprep.subr.mxu0 0.0
        %2174 = vmatpush1.msra.mxu0 0.0
        %2175 = vmatprep.subr.mxu0 0.0
        %2176 = vmatpush1.msra.mxu0 0.0
        %2177 = vmatprep.subr.mxu0 0.0
        %2178 = vmatpush1.msra.mxu0 0.0
        %2179 = vmatprep.subr.mxu0 0.0
        %2180 = vmatpush1.msra.mxu0 0.0
        %2181 = vmatprep.subr.mxu0 0.0
        %2182 = vmatpush1.msra.mxu0 0.0
        %2183 = vmatprep.subr.mxu0 0.0
        %2184 = vmatpush1.msra.mxu0 0.0
        %2185 = vmatprep.subr.mxu0 0.0
        %2186 = vmatpush1.msra.mxu0 0.0
        %2187 = vmatprep.subr.mxu0 0.0
        %2188 = vmatpush1.msra.mxu0 0.0
        %2189 = vmatprep.subr.mxu0 0.0
        %2190 = vmatpush1.msra.mxu0 0.0
        %2191 = vmatprep.subr.mxu0 0.0
        %2192 = vmatpush1.msra.mxu0 0.0
        %2193 = vmatprep.subr.mxu0 0.0
        %2194 = vmatpush1.msra.mxu0 0.0
        %2195 = vmatprep.subr.mxu0 0.0
        %2196 = vmatpush1.msra.mxu0 0.0
        %2197 = vmatprep.subr.mxu0 0.0
        %2198 = vmatpush1.msra.mxu0 0.0
        %2199 = vmatprep.subr.mxu0 0.0
        %2200 = vmatpush1.msra.mxu0 0.0
        %2201 = vmatprep.subr.mxu0 0.0
        %2202 = vmatpush1.msra.mxu0 0.0
        %2203 = vmatprep.subr.mxu0 0.0
        %2204 = vmatpush1.msra.mxu0 0.0
        %2205 = vmatprep.subr.mxu0 0.0
        %2206 = vmatpush1.msra.mxu0 0.0
        %2207 = vmatprep.subr.mxu0 0.0
        %2208 = vmatpush1.msra.mxu0 0.0
        %2209 = vmatprep.subr.mxu0 0.0
        %2210 = vmatpush1.msra.mxu0 0.0
        %2211 = vmatprep.subr.mxu0 0.0
        %2212 = vmatpush1.msra.mxu0 0.0
        %2213 = vmatprep.subr.mxu0 0.0
        %2214 = vmatpush1.msra.mxu0 0.0
        %2215 = vmatprep.mubr.f32.mxu0 0.0
        %2216 = vmatmul.mubr.f32.gmra.mrb[0].mxu0 %v2149
        %v2217 = vpop.f32.mrb[0].mxu0
        %v2218 = vadd.f32 %v2135, %v2217
        %v2219 = vpop.f32.mrb[0].mxu0
        %2220 = vdwg.mxu0
        %v2221 = vadd.f32 %v2218, %v755
        %v2222 = vtanh.pop %v2221
        %2223 = vmatprep.subr.mxu0 0.0
        %2224 = vmatpush1.msra.mxu0 %v382
        %2225 = vmatprep.subr.mxu0 0.0
        %2226 = vmatpush1.msra.mxu0 %v383
        %2227 = vmatprep.subr.mxu0 0.0
        %2228 = vmatpush1.msra.mxu0 %v384
        %2229 = vmatprep.subr.mxu0 0.0
        %2230 = vmatpush1.msra.mxu0 %v385
        %2231 = vmatprep.subr.mxu0 0.0
        %2232 = vmatpush1.msra.mxu0 0.0
        %2233 = vmatprep.subr.mxu0 0.0
        %2234 = vmatpush1.msra.mxu0 0.0
        %2235 = vmatprep.subr.mxu0 0.0
        %2236 = vmatpush1.msra.mxu0 0.0
        %2237 = vmatprep.subr.mxu0 0.0
        %2238 = vmatpush1.msra.mxu0 0.0
        %2239 = vmatprep.subr.mxu0 0.0
        %2240 = vmatpush1.msra.mxu0 0.0
        %2241 = vmatprep.subr.mxu0 0.0
        %2242 = vmatpush1.msra.mxu0 0.0
        %2243 = vmatprep.subr.mxu0 0.0
        %2244 = vmatpush1.msra.mxu0 0.0
        %2245 = vmatprep.subr.mxu0 0.0
        %2246 = vmatpush1.msra.mxu0 0.0
        %2247 = vmatprep.subr.mxu0 0.0
        %2248 = vmatpush1.msra.mxu0 0.0
        %2249 = vmatprep.subr.mxu0 0.0
        %2250 = vmatpush1.msra.mxu0 0.0
        %2251 = vmatprep.subr.mxu0 0.0
        %2252 = vmatpush1.msra.mxu0 0.0
        %2253 = vmatprep.subr.mxu0 0.0
        %2254 = vmatpush1.msra.mxu0 0.0
        %2255 = vmatprep.subr.mxu0 0.0
        %2256 = vmatpush1.msra.mxu0 0.0
        %2257 = vmatprep.subr.mxu0 0.0
        %2258 = vmatpush1.msra.mxu0 0.0
        %2259 = vmatprep.subr.mxu0 0.0
        %2260 = vmatpush1.msra.mxu0 0.0
        %2261 = vmatprep.subr.mxu0 0.0
        %2262 = vmatpush1.msra.mxu0 0.0
        %2263 = vmatprep.subr.mxu0 0.0
        %2264 = vmatpush1.msra.mxu0 0.0
        %2265 = vmatprep.subr.mxu0 0.0
        %2266 = vmatpush1.msra.mxu0 0.0
        %2267 = vmatprep.subr.mxu0 0.0
        %2268 = vmatpush1.msra.mxu0 0.0
        %2269 = vmatprep.subr.mxu0 0.0
        %2270 = vmatpush1.msra.mxu0 0.0
        %2271 = vmatprep.subr.mxu0 0.0
        %2272 = vmatpush1.msra.mxu0 0.0
        %2273 = vmatprep.subr.mxu0 0.0
        %2274 = vmatpush1.msra.mxu0 0.0
        %2275 = vmatprep.subr.mxu0 0.0
        %2276 = vmatpush1.msra.mxu0 0.0
        %2277 = vmatprep.subr.mxu0 0.0
        %2278 = vmatpush1.msra.mxu0 0.0
        %2279 = vmatprep.subr.mxu0 0.0
        %2280 = vmatpush1.msra.mxu0 0.0
        %2281 = vmatprep.subr.mxu0 0.0
        %2282 = vmatpush1.msra.mxu0 0.0
        %2283 = vmatprep.subr.mxu0 0.0
        %2284 = vmatpush1.msra.mxu0 0.0
        %2285 = vmatprep.subr.mxu0 0.0
        %2286 = vmatpush1.msra.mxu0 0.0
        %2287 = vmatprep.mubr.f32.mxu0 0.0
        %2288 = vmatmul.mubr.f32.gmra.mrb[0].mxu0 %v2149
        %v2289 = vpop.f32.mrb[0].mxu0
        %v2290 = vadd.f32 0.0, %v2289
        %v2291 = vpop.f32.mrb[0].mxu0
        %2292 = vdwg.mxu0
        %v2294 = vrot.slane %v2290, 1
        %v2295 = vrot.slane %v2290, 2
        %v2296 = vrot.slane %v2290, 3
        %v2297 = vrot.slane %v2290, 4
        %v2302 = vadd.f32 %v488, %v2294
        %v2303 = vadd.f32 %v493, %v2295
        %v2304 = vadd.f32 %v498, %v2296
        %v2305 = vadd.f32 %v503, %v2297
        %v2306 = vtanh.pop %v2302
        %v2307 = vtanh.pop %v2303
        %v2308 = vtanh.pop %v2304
        %v2309 = vtanh.pop %v2305
        %v2311 = vsel %vm506, %v2222, 0
        %2313 = vmatprep.subr.mxu0 0.0
        %2314 = vmatpush1.msra.mxu0 %v390
        %2315 = vmatprep.subr.mxu0 0.0
        %2316 = vmatpush1.msra.mxu0 %v391
        %2317 = vmatprep.subr.mxu0 0.0
        %2318 = vmatpush1.msra.mxu0 %v392
        %2319 = vmatprep.subr.mxu0 0.0
        %2320 = vmatpush1.msra.mxu0 %v393
        %2321 = vmatprep.subr.mxu0 0.0
        %2322 = vmatpush1.msra.mxu0 0.0
        %2323 = vmatprep.subr.mxu0 0.0
        %2324 = vmatpush1.msra.mxu0 0.0
        %2325 = vmatprep.subr.mxu0 0.0
        %2326 = vmatpush1.msra.mxu0 0.0
        %2327 = vmatprep.subr.mxu0 0.0
        %2328 = vmatpush1.msra.mxu0 0.0
        %2329 = vmatprep.subr.mxu0 0.0
        %2330 = vmatpush1.msra.mxu0 0.0
        %2331 = vmatprep.subr.mxu0 0.0
        %2332 = vmatpush1.msra.mxu0 0.0
        %2333 = vmatprep.subr.mxu0 0.0
        %2334 = vmatpush1.msra.mxu0 0.0
        %2335 = vmatprep.subr.mxu0 0.0
        %2336 = vmatpush1.msra.mxu0 0.0
        %2337 = vmatprep.subr.mxu0 0.0
        %2338 = vmatpush1.msra.mxu0 0.0
        %2339 = vmatprep.subr.mxu0 0.0
        %2340 = vmatpush1.msra.mxu0 0.0
        %2341 = vmatprep.subr.mxu0 0.0
        %2342 = vmatpush1.msra.mxu0 0.0
        %2343 = vmatprep.subr.mxu0 0.0
        %2344 = vmatpush1.msra.mxu0 0.0
        %2345 = vmatprep.subr.mxu0 0.0
        %2346 = vmatpush1.msra.mxu0 0.0
        %2347 = vmatprep.subr.mxu0 0.0
        %2348 = vmatpush1.msra.mxu0 0.0
        %2349 = vmatprep.subr.mxu0 0.0
        %2350 = vmatpush1.msra.mxu0 0.0
        %2351 = vmatprep.subr.mxu0 0.0
        %2352 = vmatpush1.msra.mxu0 0.0
        %2353 = vmatprep.subr.mxu0 0.0
        %2354 = vmatpush1.msra.mxu0 0.0
        %2355 = vmatprep.subr.mxu0 0.0
        %2356 = vmatpush1.msra.mxu0 0.0
        %2357 = vmatprep.subr.mxu0 0.0
        %2358 = vmatpush1.msra.mxu0 0.0
        %2359 = vmatprep.subr.mxu0 0.0
        %2360 = vmatpush1.msra.mxu0 0.0
        %2361 = vmatprep.subr.mxu0 0.0
        %2362 = vmatpush1.msra.mxu0 0.0
        %2363 = vmatprep.subr.mxu0 0.0
        %2364 = vmatpush1.msra.mxu0 0.0
        %2365 = vmatprep.subr.mxu0 0.0
        %2366 = vmatpush1.msra.mxu0 0.0
        %2367 = vmatprep.subr.mxu0 0.0
        %2368 = vmatpush1.msra.mxu0 0.0
        %2369 = vmatprep.subr.mxu0 0.0
        %2370 = vmatpush1.msra.mxu0 0.0
        %2371 = vmatprep.subr.mxu0 0.0
        %2372 = vmatpush1.msra.mxu0 0.0
        %2373 = vmatprep.subr.mxu0 0.0
        %2374 = vmatpush1.msra.mxu0 0.0
        %2375 = vmatprep.subr.mxu0 0.0
        %2376 = vmatpush1.msra.mxu0 0.0
        %2377 = vmatprep.mubr.f32.mxu0 0.0
        %2378 = vmatmul.mubr.f32.gmra.mrb[0].mxu0 %v2311
        %v2379 = vpop.f32.mrb[0].mxu0
        %v2380 = vadd.f32 0.0, %v2379
        %v2381 = vpop.f32.mrb[0].mxu0
        %2382 = vdwg.mxu0
        %v2387 = vrot.slane %v2306, 7
        %v2388 = vrot.slane %v2307, 6
        %v2389 = vsel %vm671, %v2388, %v2387
        %v2390 = vrot.slane %v2308, 5
        %v2391 = vsel %vm674, %v2390, %v2389
        %v2392 = vrot.slane %v2309, 4
        %v2393 = vsel %vm677, %v2392, %v2391
        %v2394 = vsel %vm506, %v2393, 0
        %2396 = vmatprep.subr.mxu0 0.0
        %2397 = vmatpush1.msra.mxu0 %v386
        %2398 = vmatprep.subr.mxu0 0.0
        %2399 = vmatpush1.msra.mxu0 %v387
        %2400 = vmatprep.subr.mxu0 0.0
        %2401 = vmatpush1.msra.mxu0 %v388
        %2402 = vmatprep.subr.mxu0 0.0
        %2403 = vmatpush1.msra.mxu0 %v389
        %2404 = vmatprep.subr.mxu0 0.0
        %2405 = vmatpush1.msra.mxu0 0.0
        %2406 = vmatprep.subr.mxu0 0.0
        %2407 = vmatpush1.msra.mxu0 0.0
        %2408 = vmatprep.subr.mxu0 0.0
        %2409 = vmatpush1.msra.mxu0 0.0
        %2410 = vmatprep.subr.mxu0 0.0
        %2411 = vmatpush1.msra.mxu0 0.0
        %2412 = vmatprep.subr.mxu0 0.0
        %2413 = vmatpush1.msra.mxu0 0.0
        %2414 = vmatprep.subr.mxu0 0.0
        %2415 = vmatpush1.msra.mxu0 0.0
        %2416 = vmatprep.subr.mxu0 0.0
        %2417 = vmatpush1.msra.mxu0 0.0
        %2418 = vmatprep.subr.mxu0 0.0
        %2419 = vmatpush1.msra.mxu0 0.0
        %2420 = vmatprep.subr.mxu0 0.0
        %2421 = vmatpush1.msra.mxu0 0.0
        %2422 = vmatprep.subr.mxu0 0.0
        %2423 = vmatpush1.msra.mxu0 0.0
        %2424 = vmatprep.subr.mxu0 0.0
        %2425 = vmatpush1.msra.mxu0 0.0
        %2426 = vmatprep.subr.mxu0 0.0
        %2427 = vmatpush1.msra.mxu0 0.0
        %2428 = vmatprep.subr.mxu0 0.0
        %2429 = vmatpush1.msra.mxu0 0.0
        %2430 = vmatprep.subr.mxu0 0.0
        %2431 = vmatpush1.msra.mxu0 0.0
        %2432 = vmatprep.subr.mxu0 0.0
        %2433 = vmatpush1.msra.mxu0 0.0
        %2434 = vmatprep.subr.mxu0 0.0
        %2435 = vmatpush1.msra.mxu0 0.0
        %2436 = vmatprep.subr.mxu0 0.0
        %2437 = vmatpush1.msra.mxu0 0.0
        %2438 = vmatprep.subr.mxu0 0.0
        %2439 = vmatpush1.msra.mxu0 0.0
        %2440 = vmatprep.subr.mxu0 0.0
        %2441 = vmatpush1.msra.mxu0 0.0
        %2442 = vmatprep.subr.mxu0 0.0
        %2443 = vmatpush1.msra.mxu0 0.0
        %2444 = vmatprep.subr.mxu0 0.0
        %2445 = vmatpush1.msra.mxu0 0.0
        %2446 = vmatprep.subr.mxu0 0.0
        %2447 = vmatpush1.msra.mxu0 0.0
        %2448 = vmatprep.subr.mxu0 0.0
        %2449 = vmatpush1.msra.mxu0 0.0
        %2450 = vmatprep.subr.mxu0 0.0
        %2451 = vmatpush1.msra.mxu0 0.0
        %2452 = vmatprep.subr.mxu0 0.0
        %2453 = vmatpush1.msra.mxu0 0.0
        %2454 = vmatprep.subr.mxu0 0.0
        %2455 = vmatpush1.msra.mxu0 0.0
        %2456 = vmatprep.subr.mxu0 0.0
        %2457 = vmatpush1.msra.mxu0 0.0
        %2458 = vmatprep.subr.mxu0 0.0
        %2459 = vmatpush1.msra.mxu0 0.0
        %2460 = vmatprep.mubr.f32.mxu0 0.0
        %2461 = vmatmul.mubr.f32.gmra.mrb[0].mxu0 %v2394
        %v2462 = vpop.f32.mrb[0].mxu0
        %v2463 = vadd.f32 %v2380, %v2462
        %v2464 = vpop.f32.mrb[0].mxu0
        %2465 = vdwg.mxu0
        %v2466 = vadd.f32 %v2463, %v755
        %v2467 = vtanh.pop %v2466
        %v2468 = vld [vmem:[%s7] sm:$0xff]
        %v2469 = vld [vmem:[%s7 + $0x8] sm:$0xff]
        %v2470 = vld [vmem:[%s7 + $0x10] sm:$0xff]
        %v2471 = vld [vmem:[%s7 + $0x18] sm:$0xff]
        %v2472 = vld [vmem:[%s8] sm:$0x1]
        %v2474 = vlaneseq
        %v2475 = vshrl.u32 %v2474, 7
        %v2476 = vsub.s32 0, %v2475
        %v2477 = vrot.slane %v2472, %v2476
        %v2480 = vsel %vm506, %v2467, 0
        %2482 = vmatprep.subr.mxu0 0.0
        %2483 = vmatpush1.msra.mxu0 %v2468
        %2484 = vmatprep.subr.mxu0 0.0
        %2485 = vmatpush1.msra.mxu0 %v2469
        %2486 = vmatprep.subr.mxu0 0.0
        %2487 = vmatpush1.msra.mxu0 %v2470
        %2488 = vmatprep.subr.mxu0 0.0
        %2489 = vmatpush1.msra.mxu0 %v2471
        %2490 = vmatprep.subr.mxu0 0.0
        %2491 = vmatpush1.msra.mxu0 0.0
        %2492 = vmatprep.subr.mxu0 0.0
        %2493 = vmatpush1.msra.mxu0 0.0
        %2494 = vmatprep.subr.mxu0 0.0
        %2495 = vmatpush1.msra.mxu0 0.0
        %2496 = vmatprep.subr.mxu0 0.0
        %2497 = vmatpush1.msra.mxu0 0.0
        %2498 = vmatprep.subr.mxu0 0.0
        %2499 = vmatpush1.msra.mxu0 0.0
        %2500 = vmatprep.subr.mxu0 0.0
        %2501 = vmatpush1.msra.mxu0 0.0
        %2502 = vmatprep.subr.mxu0 0.0
        %2503 = vmatpush1.msra.mxu0 0.0
        %2504 = vmatprep.subr.mxu0 0.0
        %2505 = vmatpush1.msra.mxu0 0.0
        %2506 = vmatprep.subr.mxu0 0.0
        %2507 = vmatpush1.msra.mxu0 0.0
        %2508 = vmatprep.subr.mxu0 0.0
        %2509 = vmatpush1.msra.mxu0 0.0
        %2510 = vmatprep.subr.mxu0 0.0
        %2511 = vmatpush1.msra.mxu0 0.0
        %2512 = vmatprep.subr.mxu0 0.0
        %2513 = vmatpush1.msra.mxu0 0.0
        %2514 = vmatprep.subr.mxu0 0.0
        %2515 = vmatpush1.msra.mxu0 0.0
        %2516 = vmatprep.subr.mxu0 0.0
        %2517 = vmatpush1.msra.mxu0 0.0
        %2518 = vmatprep.subr.mxu0 0.0
        %2519 = vmatpush1.msra.mxu0 0.0
        %2520 = vmatprep.subr.mxu0 0.0
        %2521 = vmatpush1.msra.mxu0 0.0
        %2522 = vmatprep.subr.mxu0 0.0
        %2523 = vmatpush1.msra.mxu0 0.0
        %2524 = vmatprep.subr.mxu0 0.0
        %2525 = vmatpush1.msra.mxu0 0.0
        %2526 = vmatprep.subr.mxu0 0.0
        %2527 = vmatpush1.msra.mxu0 0.0
        %2528 = vmatprep.subr.mxu0 0.0
        %2529 = vmatpush1.msra.mxu0 0.0
        %2530 = vmatprep.subr.mxu0 0.0
        %2531 = vmatpush1.msra.mxu0 0.0
        %2532 = vmatprep.subr.mxu0 0.0
        %2533 = vmatpush1.msra.mxu0 0.0
        %2534 = vmatprep.subr.mxu0 0.0
        %2535 = vmatpush1.msra.mxu0 0.0
        %2536 = vmatprep.subr.mxu0 0.0
        %2537 = vmatpush1.msra.mxu0 0.0
        %2538 = vmatprep.subr.mxu0 0.0
        %2539 = vmatpush1.msra.mxu0 0.0
        %2540 = vmatprep.subr.mxu0 0.0
        %2541 = vmatpush1.msra.mxu0 0.0
        %2542 = vmatprep.subr.mxu0 0.0
        %2543 = vmatpush1.msra.mxu0 0.0
        %2544 = vmatprep.subr.mxu0 0.0
        %2545 = vmatpush1.msra.mxu0 0.0
        %2546 = vmatprep.mubr.f32.mxu0 0.0
        %2547 = vmatmul.mubr.f32.gmra.mrb[0].mxu0 %v2480
        %v2548 = vpop.f32.mrb[0].mxu0
        %v2549 = vadd.f32 %v2477, %v2548
        %v2550 = vpop.f32.mrb[0].mxu0
        %2551 = vdwg.mxu0
        %v2554 = vunpack.c.l.s4 1966171168
        %v2555 = vunpack.c.0.s8 %v2554
        %v2556 = vlaneseq
        %v2557 = vshrl.u32 %v2556, 7
        %v2558 = vsub.s32 %v2555, %v2557
        %v2559 = vrot.slane %v2549, %v2558
        %v2560 = vcombine.high %v2559, %v2559
        %v2562 = vunpack.c.l.s4 1966171168
        %v2563 = vunpack.c.0.s8 %v2562
        %v2564 = vlaneseq
        %v2565 = vshrl.u32 %v2564, 7
        %v2566 = vsub.s32 %v2563, %v2565
        %v2567 = vrot.slane %v2559, %v2566
        %v2569 = vunpack.c.l.s4 1966171168
        %v2570 = vunpack.c.0.s8 %v2569
        %v2571 = vlaneseq
        %v2572 = vshrl.u32 %v2571, 7
        %v2573 = vsub.s32 %v2570, %v2572
        %v2574 = vrot.slane %v2560, %v2573
        %v2575 = vcombine.high %v2567, %v2567
        %v2576 = vcombine.high %v2574, %v2574
        %vm2581 = vcmask 122880
        %2582 = vst.msk [vmem:[%s379] sm:$0x1] %vm2581, %v2567
        %2583 = vst.msk [vmem:[%s379 + $0x1] sm:$0x1] %vm2581, %v2574
        %2584 = vst.msk [vmem:[%s379 + $0x2] sm:$0x1] %vm2581, %v2575
        %2585 = vst.msk [vmem:[%s379 + $0x3] sm:$0x1] %vm2581, %v2576
        %s2586 = sand.u32 %s229, 1
        %s2587 = scalar_lea.sflag [#allocation4], %s2586
        %s2588 = sand.u32 %s229, 1
        %s2589 = smul.addr %s2588, 4
        %s2590 = scalar_lea.vmem [#allocation8], %s2589
        // Predicated region
        $region69: #{tpu_custom_call.1} parent=55 // pred_check
          %p2591 = pneg %p239
        $region70: #{tpu_custom_call.1} parent=55 // pred_check_branch
          %2593 = sbr.rel (%p2591) target = $region72
        $region71: #{tpu_custom_call.1} parent=55 // pred_region
          %s2594 = smul.u32 4, %s27
          %s2596 = ssub.s32 64, 64
          %2597 = vsyncadd %s2587, %s2596
          %s2598 = smul.addr %s2594, 16
          %s2599 = scalar_lea.hbm %s9, %s2598
          %s2600 = sshll.u32 %s2590, 4
          %s2601 = int_to_ptr.vmem [resolvable:$true] %s2600
          %2606 = dma.vmem_to_hbm [thread:$0]  %s2601, 64, %s2599, %s2587, 16, 16, 1
        $region72: #{tpu_custom_call.1} parent=55 // pred_fallthru
          _
      $region56: #{tpu_custom_call.1} parent=5 // pred_fallthru
        _
      %p2607 = scmp.le.s32.totalorder 2, %s22
      // Predicated region
      $region73: #{tpu_custom_call.1} parent=5 // pred_check
        %p2608 = pneg %p2607
      $region74: #{tpu_custom_call.1} parent=5 // pred_check_branch
        %2610 = sbr.rel (%p2608) target = $region76
      $region75: #{tpu_custom_call.1} parent=5 // pred_region
        %s2611 = ssub.s32 %s22, 2
        // Predicated region
        $region77: #{tpu_custom_call.1} parent=75 // pred_check
          %p2612 = pneg %p245
        $region78: #{tpu_custom_call.1} parent=75 // pred_check_branch
          %2614 = sbr.rel (%p2612) target = $region80
        $region79: #{tpu_custom_call.1} parent=75 // pred_region
          %s2615 = sand.u32 %s230, 1
          %s2616 = scalar_lea.sflag [#allocation4], %s2615
          %s2617 = sand.u32 %s230, 1
          %s2618 = smul.addr %s2617, 4
          %s2619 = scalar_lea.vmem [#allocation8], %s2618
          %2620 = dma.done %s2616, 64
        $region80: #{tpu_custom_call.1} parent=75 // pred_fallthru
          _
      $region76: #{tpu_custom_call.1} parent=5 // pred_fallthru
        _
    $region6: #{tpu_custom_call.1} parent=1 // loop_footer
      %s26 = sadd.s32 1, %s22
    $region7: #{tpu_custom_call.1} parent=1 // loop_footer_branch
      %21 = sbr.rel target = $region3
    $region8: #{tpu_custom_call.1} parent=1 // loop_exit
      _
    %2621 = vsyncpa [#allocation3], 1
    %s2622 = scalar_lea.sflag [#allocation3], 1
    %2623 = vsyncpa %s2622, 1
    %2624 = vsyncpa [#allocation6], 1
    %2625 = vsyncpa [#allocation4], 1
    %s2626 = scalar_lea.sflag [#allocation4], 1
    %2627 = vsyncpa %s2626, 1

</llo_original>
